<compile_context>
chip_gen: v6e
topology: v6e:2x2x1
jax: 0.10.0
libtpu: 0.0.40
codegen_flags: <defaults>
</compile_context>

<pallas_src>
import numpy as np
import jax
import jax.numpy as jnp
from jax.experimental import pallas as pl
from jax.experimental.pallas import tpu as pltpu

EPS = 1e-5


# ----------------------------------------------------------------------------
# Fused kernel wrapper: deconv1 + BN + ReLU + deconv2 + BN + ReLU + deconv3.
# ----------------------------------------------------------------------------
def decoder_forward(x, params):
    """x: (B, T, E)  ->  (B, 1, 8*T), matching the PyTorch Decoder output."""
    B, T, E = x.shape
    NBT = B * T
    p1, p2, p3 = params

    def kernel(x_ref, we1_ref, wo1_ref, b1_ref, ga1_ref, be1_ref,
               we2_ref, wo2_ref, b2_ref, ga2_ref, be2_ref,
               w3_ref, b3_ref, out_ref):
        f32, bf16 = jnp.float32, jnp.bfloat16

        # Rows are b*T + m (time-ordered per batch).  Rows where a +/-1 shift
        # crosses a batch boundary must be zeroed (= zero padding of the
        # transposed convolution).
        ridx = jax.lax.broadcasted_iota(jnp.int32, (NBT, 1), 0)
        m_in_seq = ridx % T
        not_last = m_in_seq != (T - 1)
        not_first = m_in_seq != 0

        def at_next(s):       # s evaluated at m+1 (zero past the sequence end)
            return jnp.where(not_last, pltpu.roll(s, NBT - 1, 0), 0.0)

        def at_prev(s):       # s evaluated at m-1 (zero before the start)
            return jnp.where(not_first, pltpu.roll(s, 1, 0), 0.0)

        def neighbours(streams):
            # streams[p][b*T + m] == layer input at time P*m + p.  Returns the
            # row-stacked h[t+1], h[t], h[t-1] for every stream (stream-major).
            P = len(streams)
            nxt = [streams[p + 1] if p + 1 < P else at_next(streams[0])
                   for p in range(P)]
            prv = [streams[p - 1] if p >= 1 else at_prev(streams[P - 1])
                   for p in range(P)]
            cat = lambda xs: xs[0] if len(xs) == 1 else jnp.concatenate(xs, axis=0)
            return cat(nxt), cat(streams), cat(prv)

        def deconv(streams, we_ref, wo_ref, b_ref, cin):
            # ConvTranspose1d(k=5, s=2, p=2, op=1) decomposed into output phases:
            #   even = h[t+1]@W0 + h[t]@W2 + h[t-1]@W4 + b
            #   odd  = h[t+1]@W1 + h[t]@W3             + b
            nxt, cur, prv = neighbours(streams)
            xcat = jnp.concatenate([nxt, cur, prv], axis=1).astype(bf16)
            bias = b_ref[...]
            ev = jnp.dot(xcat, we_ref[...], preferred_element_type=f32) + bias
            od = jnp.dot(xcat[:, :2 * cin], wo_ref[...],
                         preferred_element_type=f32) + bias
            return ev, od

        def bn_relu(ev, od, ga_ref, be_ref):
            # Training-mode BatchNorm1d: biased batch stats over every (b, t).
            inv_n = 1.0 / (ev.shape[0] + od.shape[0])
            mean = (jnp.sum(ev, axis=0, keepdims=True)
                    + jnp.sum(od, axis=0, keepdims=True)) * inv_n
            var = (jnp.sum((ev - mean) ** 2, axis=0, keepdims=True)
                   + jnp.sum((od - mean) ** 2, axis=0, keepdims=True)) * inv_n
            scale = jax.lax.rsqrt(var + EPS) * ga_ref[...]
            shift = be_ref[...] - mean * scale
            return (jnp.maximum(ev * scale + shift, 0.0),
                    jnp.maximum(od * scale + shift, 0.0))

        def split_phases(ev, od):
            # Input stream p, output parity q  ->  output stream (phase) 2p + q.
            P = ev.shape[0] // NBT
            out = []
            for p in range(P):
                out.append(ev[p * NBT:(p + 1) * NBT])
                out.append(od[p * NBT:(p + 1) * NBT])
            return out

        # Layer 1: 256 -> 128, + BN + ReLU   (1 stream in, 2 phase streams out).
        x0 = x_ref[...].astype(f32)
        ev, od = deconv([x0], we1_ref, wo1_ref, b1_ref, E)
        ev, od = bn_relu(ev, od, ga1_ref, be1_ref)
        streams = split_phases(ev, od)

        # Layer 2: 128 -> 64, + BN + ReLU    (2 streams in, 4 out).
        ev, od = deconv(streams, we2_ref, wo2_ref, b2_ref, 128)
        ev, od = bn_relu(ev, od, ga2_ref, be2_ref)
        streams = split_phases(ev, od)

        # Layer 3: 64 -> 1 (no BN/ReLU).  Cout=1 per parity, so the two parities
        # become the 2 output lanes; the 4 input streams stay row-stacked.
        nxt, cur, prv = neighbours(streams)
        w3 = w3_ref[...]                       # (3*64, 2): rows = [next; cur; prev]
        c3 = w3.shape[0] // 3
        y = (jnp.dot(nxt.astype(bf16), w3[0:c3], preferred_element_type=f32)
             + jnp.dot(cur.astype(bf16), w3[c3:2 * c3], preferred_element_type=f32)
             + jnp.dot(prv.astype(bf16), w3[2 * c3:3 * c3],
                       preferred_element_type=f32)
             + b3_ref[...])                    # (4*B*T, 2), phase-major
        out_ref[...] = y

    vmem = pl.BlockSpec(memory_space=pltpu.MemorySpace.VMEM)
    y = pl.pallas_call(
        kernel,
        out_shape=jax.ShapeDtypeStruct((4 * NBT, 2), jnp.float32),
        in_specs=[vmem] * 13,
        out_specs=vmem,
        compiler_params=pltpu.CompilerParams(vmem_limit_bytes=32 * 1024 * 1024),
    )(x.reshape(NBT, E).astype(jnp.bfloat16),
      p1["we"], p1["wo"], p1["bias"], p1["gamma"], p1["beta"],
      p2["we"], p2["wo"], p2["bias"], p2["gamma"], p2["beta"],
      p3["w3"], p3["bias"])

    # Final phase interleave (512 bytes, pure layout):
    #   out[b, 8*m + 2*p + q] = y[p*B*T + b*T + m, q]
    y = y.reshape(4, B, T, 2)
    y = jnp.transpose(y, (1, 2, 0, 3))
    return y.reshape(B, 1, 8 * T)


# ----------------------------------------------------------------------------
# Parameter construction (PyTorch-style init) + packing for the kernel.
# ----------------------------------------------------------------------------
def init_params(key, embedding_dim=256):
    sizes = [(embedding_dim, 128), (128, 64), (64, 1)]
    params = []
    for i, (cin, cout) in enumerate(sizes):
        key, kw, kb, kg, kbe = jax.random.split(key, 5)
        bound = 1.0 / np.sqrt(cin * 5)
        w = jax.random.uniform(kw, (cin, cout, 5), jnp.float32, -bound, bound)
        b = jax.random.uniform(kb, (cout,), jnp.float32, -bound, bound)
        wn = np.asarray(w, np.float32)
        p = dict(w_pt=w, b_pt=b)
        if i < 2:
            gamma = 1.0 + 0.1 * jax.random.normal(kg, (cout,), jnp.float32)
            beta = 0.1 * jax.random.normal(kbe, (cout,), jnp.float32)
            p["gamma_pt"], p["beta_pt"] = gamma, beta
            # Even taps [W0;W2;W4] -> (3*Cin, Cout); odd taps [W1;W3] -> (2*Cin, Cout).
            we = np.concatenate([wn[:, :, 0], wn[:, :, 2], wn[:, :, 4]], axis=0)
            wo = np.concatenate([wn[:, :, 1], wn[:, :, 3]], axis=0)
            p["we"] = jnp.asarray(we, jnp.bfloat16)        # bf16 on the wire
            p["wo"] = jnp.asarray(wo, jnp.bfloat16)
            p["bias"] = jnp.asarray(np.asarray(b).reshape(1, cout))   # f32
            p["gamma"] = gamma.reshape(1, cout)                        # f32
            p["beta"] = beta.reshape(1, cout)                          # f32
        else:
            p["gamma_pt"], p["beta_pt"] = None, None
            # Final layer: (3*Cin, 2) with cols [even, odd]; rows = [next; cur; prev].
            w3 = np.zeros((3 * cin, 2), np.float32)
            w3[0:cin, 0] = wn[:, 0, 0]
            w3[0:cin, 1] = wn[:, 0, 1]
            w3[cin:2 * cin, 0] = wn[:, 0, 2]
            w3[cin:2 * cin, 1] = wn[:, 0, 3]
            w3[2 * cin:3 * cin, 0] = wn[:, 0, 4]
            p["w3"] = jnp.asarray(w3, jnp.bfloat16)
            p["bias"] = jnp.asarray(np.asarray(b).reshape(1, 1))       # f32
        params.append(p)
    return params


def ref_forward(x, params):
    """NumPy reference of the PyTorch forward (training-mode BN), f64."""
    h = np.transpose(np.asarray(x, np.float64), (0, 2, 1))      # (B, E, T)
    for p in params:
        w = np.asarray(p["w_pt"], np.float64)                   # (Cin, Cout, 5)
        bias = np.asarray(p["b_pt"], np.float64)
        B, _, L = h.shape
        Cout = w.shape[1]
        Lout = 2 * L
        y = np.zeros((B, Cout, Lout), np.float64)
        for l in range(L):
            for k in range(5):
                t = 2 * l - 2 + k
                if 0 <= t < Lout:
                    y[:, :, t] += h[:, :, l] @ w[:, :, k]
        y += bias[None, :, None]
        if p["gamma_pt"] is not None:
            g = np.asarray(p["gamma_pt"], np.float64)
            be = np.asarray(p["beta_pt"], np.float64)
            mean = y.mean(axis=(0, 2), keepdims=True)
            var = y.var(axis=(0, 2), keepdims=True)
            y = (y - mean) / np.sqrt(var + EPS) * g[None, :, None] + be[None, :, None]
            y = np.maximum(y, 0.0)
        h = y
    return h
    # TODO(synk): BatchNorm running_mean/var buffer updates (a training-time
    # side effect that does not change the forward output) are not modeled.


if __name__ == "__main__":
    B, T, E = 2, 8, 256
    key = jax.random.PRNGKey(0)
    key, kx = jax.random.split(key)
    x = jax.random.normal(kx, (B, T, E), jnp.float32)
    params = init_params(key, E)

    out = jax.block_until_ready(decoder_forward(x, params))
    assert out.shape == (B, 1, 8 * T), out.shape

    ref = ref_forward(np.asarray(x), params)
    # bf16 matmul operands with f32 accumulation sit at ~1e-3 abs error here.
    np.testing.assert_allclose(np.asarray(out, np.float64), ref, rtol=2e-2, atol=2e-2)
    print("KERNEL_OK")
</pallas_src>

<mosaic_0001>
module attributes {stable_mosaic.version = 11 : i64} {
  func.func @kernel(%arg0: memref<16x256xbf16, #tpu.memory_space<vmem>>, %arg1: memref<768x128xbf16, #tpu.memory_space<vmem>>, %arg2: memref<512x128xbf16, #tpu.memory_space<vmem>>, %arg3: memref<1x128xf32, #tpu.memory_space<vmem>>, %arg4: memref<1x128xf32, #tpu.memory_space<vmem>>, %arg5: memref<1x128xf32, #tpu.memory_space<vmem>>, %arg6: memref<384x64xbf16, #tpu.memory_space<vmem>>, %arg7: memref<256x64xbf16, #tpu.memory_space<vmem>>, %arg8: memref<1x64xf32, #tpu.memory_space<vmem>>, %arg9: memref<1x64xf32, #tpu.memory_space<vmem>>, %arg10: memref<1x64xf32, #tpu.memory_space<vmem>>, %arg11: memref<192x2xbf16, #tpu.memory_space<vmem>>, %arg12: memref<1x1xf32, #tpu.memory_space<vmem>>, %arg13: memref<64x2xf32, #tpu.memory_space<vmem>>) attributes {dimension_semantics = [], scalar_prefetch = 0 : i64, scratch_operands = 0 : i64, tpu.core_type = #tpu.core_type<tc>} {
    %0 = tpu.iota {dimensions = array<i32: 0>} : vector<16x1xi32>
    %c8_i32 = arith.constant 8 : i32
    %c0_i32 = arith.constant 0 : i32
    %1 = arith.cmpi eq, %c8_i32, %c0_i32 : i32
    %c1_i32 = arith.constant 1 : i32
    %2 = arith.select %1, %c1_i32, %c8_i32 : i32
    %3 = vector.broadcast %2 : i32 to vector<16x1xi32>
    %4 = arith.remsi %0, %3 : vector<16x1xi32>
    %c0_i32_0 = arith.constant 0 : i32
    %5 = vector.broadcast %c0_i32_0 : i32 to vector<16x1xi32>
    %6 = arith.cmpi ne, %4, %5 : vector<16x1xi32>
    %c0_i32_1 = arith.constant 0 : i32
    %7 = vector.broadcast %c0_i32_1 : i32 to vector<16x1xi32>
    %8 = arith.cmpi slt, %4, %7 : vector<16x1xi32>
    %c0_i32_2 = arith.constant 0 : i32
    %9 = arith.cmpi slt, %2, %c0_i32_2 : i32
    %10 = vector.broadcast %9 : i1 to vector<16x1xi1>
    %11 = vector.broadcast %10 : vector<16x1xi1> to vector<16x1xi1>
    %12 = arith.xori %8, %11 : vector<16x1xi1>
    %13 = arith.andi %12, %6 : vector<16x1xi1>
    %14 = vector.broadcast %2 : i32 to vector<16x1xi32>
    %15 = arith.addi %4, %14 : vector<16x1xi32>
    %16 = arith.select %13, %15, %4 : vector<16x1xi1>, vector<16x1xi32>
    %c7_i32 = arith.constant 7 : i32
    %17 = vector.broadcast %c7_i32 : i32 to vector<16x1xi32>
    %18 = arith.cmpi ne, %16, %17 : vector<16x1xi32>
    %c0_i32_3 = arith.constant 0 : i32
    %19 = vector.broadcast %c0_i32_3 : i32 to vector<16x1xi32>
    %20 = arith.cmpi ne, %16, %19 : vector<16x1xi32>
    %c0 = arith.constant 0 : index
    %c0_4 = arith.constant 0 : index
    %21 = vector.load %arg0[%c0, %c0_4] : memref<16x256xbf16, #tpu.memory_space<vmem>>, vector<16x256xbf16>
    %22 = arith.extf %21 : vector<16x256xbf16> to vector<16x256xf32>
    %c15_i32 = arith.constant 15 : i32
    %23 = tpu.dynamic_rotate %22 by %c15_i32 dim 0 : vector<16x256xf32>, i32 -> vector<16x256xf32>
    %cst = arith.constant 0.000000e+00 : f32
    %24 = vector.shape_cast %18 : vector<16x1xi1> to vector<16x1xi1>
    %25 = vector.broadcast %24 : vector<16x1xi1> to vector<16x256xi1>
    %26 = vector.broadcast %cst : f32 to vector<16x256xf32>
    %27 = arith.select %25, %23, %26 : vector<16x256xi1>, vector<16x256xf32>
    %c1_i32_5 = arith.constant 1 : i32
    %28 = tpu.dynamic_rotate %22 by %c1_i32_5 dim 0 : vector<16x256xf32>, i32 -> vector<16x256xf32>
    %cst_6 = arith.constant 0.000000e+00 : f32
    %29 = vector.shape_cast %20 : vector<16x1xi1> to vector<16x1xi1>
    %30 = vector.broadcast %29 : vector<16x1xi1> to vector<16x256xi1>
    %31 = vector.broadcast %cst_6 : f32 to vector<16x256xf32>
    %32 = arith.select %30, %28, %31 : vector<16x256xi1>, vector<16x256xf32>
    %33 = tpu.concatenate %27, %22, %32 in 1 : vector<16x256xf32>, vector<16x256xf32>, vector<16x256xf32> -> vector<16x768xf32>
    %34 = arith.truncf %33 : vector<16x768xf32> to vector<16x768xbf16>
    %c0_7 = arith.constant 0 : index
    %c0_8 = arith.constant 0 : index
    %35 = vector.load %arg3[%c0_7, %c0_8] : memref<1x128xf32, #tpu.memory_space<vmem>>, vector<1x128xf32>
    %c0_9 = arith.constant 0 : index
    %c0_10 = arith.constant 0 : index
    %36 = vector.load %arg1[%c0_9, %c0_10] : memref<768x128xbf16, #tpu.memory_space<vmem>>, vector<768x128xbf16>
    %cst_11 = arith.constant dense<0.000000e+00> : vector<16x128xf32>
    %37 = tpu.matmul %34, %36, %cst_11 {dimension_numbers = #tpu.dot_dimension_numbers<[1], [0], [0], [1], [0, 0, 1, 1], [], []>} : vector<16x768xbf16>, vector<768x128xbf16>, vector<16x128xf32> -> vector<16x128xf32>
    %38 = vector.broadcast %35 : vector<1x128xf32> to vector<16x128xf32>
    %39 = arith.addf %37, %38 : vector<16x128xf32>
    %40 = vector.extract_strided_slice %34 {offsets = [0, 0], sizes = [16, 512], strides = [1, 1]} : vector<16x768xbf16> to vector<16x512xbf16>
    %c0_12 = arith.constant 0 : index
    %c0_13 = arith.constant 0 : index
    %41 = vector.load %arg2[%c0_12, %c0_13] : memref<512x128xbf16, #tpu.memory_space<vmem>>, vector<512x128xbf16>
    %cst_14 = arith.constant dense<0.000000e+00> : vector<16x128xf32>
    %42 = tpu.matmul %40, %41, %cst_14 {dimension_numbers = #tpu.dot_dimension_numbers<[1], [0], [0], [1], [0, 0, 1, 1], [], []>} : vector<16x512xbf16>, vector<512x128xbf16>, vector<16x128xf32> -> vector<16x128xf32>
    %43 = vector.broadcast %35 : vector<1x128xf32> to vector<16x128xf32>
    %44 = arith.addf %42, %43 : vector<16x128xf32>
    %cst_15 = arith.constant dense<0.000000e+00> : vector<128xf32>
    %45 = vector.multi_reduction <add>, %39, %cst_15 [0] : vector<16x128xf32> to vector<128xf32>
    %46 = vector.shape_cast %45 : vector<128xf32> to vector<1x128xf32>
    %cst_16 = arith.constant dense<0.000000e+00> : vector<128xf32>
    %47 = vector.multi_reduction <add>, %44, %cst_16 [0] : vector<16x128xf32> to vector<128xf32>
    %48 = vector.shape_cast %47 : vector<128xf32> to vector<1x128xf32>
    %49 = arith.addf %46, %48 : vector<1x128xf32>
    %cst_17 = arith.constant 3.125000e-02 : f32
    %50 = vector.broadcast %cst_17 : f32 to vector<1x128xf32>
    %51 = arith.mulf %49, %50 : vector<1x128xf32>
    %52 = vector.broadcast %51 : vector<1x128xf32> to vector<16x128xf32>
    %53 = arith.subf %39, %52 : vector<16x128xf32>
    %54 = arith.mulf %53, %53 : vector<16x128xf32>
    %cst_18 = arith.constant dense<0.000000e+00> : vector<128xf32>
    %55 = vector.multi_reduction <add>, %54, %cst_18 [0] : vector<16x128xf32> to vector<128xf32>
    %56 = vector.shape_cast %55 : vector<128xf32> to vector<1x128xf32>
    %57 = vector.broadcast %51 : vector<1x128xf32> to vector<16x128xf32>
    %58 = arith.subf %44, %57 : vector<16x128xf32>
    %59 = arith.mulf %58, %58 : vector<16x128xf32>
    %cst_19 = arith.constant dense<0.000000e+00> : vector<128xf32>
    %60 = vector.multi_reduction <add>, %59, %cst_19 [0] : vector<16x128xf32> to vector<128xf32>
    %61 = vector.shape_cast %60 : vector<128xf32> to vector<1x128xf32>
    %62 = arith.addf %56, %61 : vector<1x128xf32>
    %cst_20 = arith.constant 3.125000e-02 : f32
    %63 = vector.broadcast %cst_20 : f32 to vector<1x128xf32>
    %64 = arith.mulf %62, %63 : vector<1x128xf32>
    %cst_21 = arith.constant 9.99999974E-6 : f32
    %65 = vector.broadcast %cst_21 : f32 to vector<1x128xf32>
    %66 = arith.addf %64, %65 : vector<1x128xf32>
    %67 = math.rsqrt %66 : vector<1x128xf32>
    %c0_22 = arith.constant 0 : index
    %c0_23 = arith.constant 0 : index
    %68 = vector.load %arg4[%c0_22, %c0_23] : memref<1x128xf32, #tpu.memory_space<vmem>>, vector<1x128xf32>
    %69 = arith.mulf %67, %68 : vector<1x128xf32>
    %c0_24 = arith.constant 0 : index
    %c0_25 = arith.constant 0 : index
    %70 = vector.load %arg5[%c0_24, %c0_25] : memref<1x128xf32, #tpu.memory_space<vmem>>, vector<1x128xf32>
    %71 = arith.mulf %51, %69 : vector<1x128xf32>
    %72 = arith.subf %70, %71 : vector<1x128xf32>
    %73 = vector.broadcast %69 : vector<1x128xf32> to vector<16x128xf32>
    %74 = arith.mulf %39, %73 : vector<16x128xf32>
    %75 = vector.broadcast %72 : vector<1x128xf32> to vector<16x128xf32>
    %76 = arith.addf %74, %75 : vector<16x128xf32>
    %cst_26 = arith.constant 0.000000e+00 : f32
    %77 = vector.broadcast %cst_26 : f32 to vector<16x128xf32>
    %78 = arith.maximumf %76, %77 : vector<16x128xf32>
    %79 = vector.broadcast %69 : vector<1x128xf32> to vector<16x128xf32>
    %80 = arith.mulf %44, %79 : vector<16x128xf32>
    %81 = vector.broadcast %72 : vector<1x128xf32> to vector<16x128xf32>
    %82 = arith.addf %80, %81 : vector<16x128xf32>
    %cst_27 = arith.constant 0.000000e+00 : f32
    %83 = vector.broadcast %cst_27 : f32 to vector<16x128xf32>
    %84 = arith.maximumf %82, %83 : vector<16x128xf32>
    %c15_i32_28 = arith.constant 15 : i32
    %85 = tpu.dynamic_rotate %78 by %c15_i32_28 dim 0 : vector<16x128xf32>, i32 -> vector<16x128xf32>
    %cst_29 = arith.constant 0.000000e+00 : f32
    %86 = vector.shape_cast %18 : vector<16x1xi1> to vector<16x1xi1>
    %87 = vector.broadcast %86 : vector<16x1xi1> to vector<16x128xi1>
    %88 = vector.broadcast %cst_29 : f32 to vector<16x128xf32>
    %89 = arith.select %87, %85, %88 : vector<16x128xi1>, vector<16x128xf32>
    %c1_i32_30 = arith.constant 1 : i32
    %90 = tpu.dynamic_rotate %84 by %c1_i32_30 dim 0 : vector<16x128xf32>, i32 -> vector<16x128xf32>
    %cst_31 = arith.constant 0.000000e+00 : f32
    %91 = vector.shape_cast %20 : vector<16x1xi1> to vector<16x1xi1>
    %92 = vector.broadcast %91 : vector<16x1xi1> to vector<16x128xi1>
    %93 = vector.broadcast %cst_31 : f32 to vector<16x128xf32>
    %94 = arith.select %92, %90, %93 : vector<16x128xi1>, vector<16x128xf32>
    %95 = tpu.concatenate %84, %89 in 0 : vector<16x128xf32>, vector<16x128xf32> -> vector<32x128xf32>
    %96 = tpu.concatenate %78, %84 in 0 : vector<16x128xf32>, vector<16x128xf32> -> vector<32x128xf32>
    %97 = tpu.concatenate %94, %78 in 0 : vector<16x128xf32>, vector<16x128xf32> -> vector<32x128xf32>
    %98 = tpu.concatenate %95, %96, %97 in 1 : vector<32x128xf32>, vector<32x128xf32>, vector<32x128xf32> -> vector<32x384xf32>
    %99 = arith.truncf %98 : vector<32x384xf32> to vector<32x384xbf16>
    %c0_32 = arith.constant 0 : index
    %c0_33 = arith.constant 0 : index
    %100 = vector.load %arg8[%c0_32, %c0_33] : memref<1x64xf32, #tpu.memory_space<vmem>>, vector<1x64xf32>
    %c0_34 = arith.constant 0 : index
    %c0_35 = arith.constant 0 : index
    %101 = vector.load %arg6[%c0_34, %c0_35] : memref<384x64xbf16, #tpu.memory_space<vmem>>, vector<384x64xbf16>
    %cst_36 = arith.constant dense<0.000000e+00> : vector<32x64xf32>
    %102 = tpu.matmul %99, %101, %cst_36 {dimension_numbers = #tpu.dot_dimension_numbers<[1], [0], [0], [1], [0, 0, 1, 1], [], []>} : vector<32x384xbf16>, vector<384x64xbf16>, vector<32x64xf32> -> vector<32x64xf32>
    %103 = vector.broadcast %100 : vector<1x64xf32> to vector<32x64xf32>
    %104 = arith.addf %102, %103 : vector<32x64xf32>
    %105 = vector.extract_strided_slice %99 {offsets = [0, 0], sizes = [32, 256], strides = [1, 1]} : vector<32x384xbf16> to vector<32x256xbf16>
    %c0_37 = arith.constant 0 : index
    %c0_38 = arith.constant 0 : index
    %106 = vector.load %arg7[%c0_37, %c0_38] : memref<256x64xbf16, #tpu.memory_space<vmem>>, vector<256x64xbf16>
    %cst_39 = arith.constant dense<0.000000e+00> : vector<32x64xf32>
    %107 = tpu.matmul %105, %106, %cst_39 {dimension_numbers = #tpu.dot_dimension_numbers<[1], [0], [0], [1], [0, 0, 1, 1], [], []>} : vector<32x256xbf16>, vector<256x64xbf16>, vector<32x64xf32> -> vector<32x64xf32>
    %108 = vector.broadcast %100 : vector<1x64xf32> to vector<32x64xf32>
    %109 = arith.addf %107, %108 : vector<32x64xf32>
    %cst_40 = arith.constant dense<0.000000e+00> : vector<64xf32>
    %110 = vector.multi_reduction <add>, %104, %cst_40 [0] : vector<32x64xf32> to vector<64xf32>
    %111 = vector.shape_cast %110 : vector<64xf32> to vector<1x64xf32>
    %cst_41 = arith.constant dense<0.000000e+00> : vector<64xf32>
    %112 = vector.multi_reduction <add>, %109, %cst_41 [0] : vector<32x64xf32> to vector<64xf32>
    %113 = vector.shape_cast %112 : vector<64xf32> to vector<1x64xf32>
    %114 = arith.addf %111, %113 : vector<1x64xf32>
    %cst_42 = arith.constant 1.562500e-02 : f32
    %115 = vector.broadcast %cst_42 : f32 to vector<1x64xf32>
    %116 = arith.mulf %114, %115 : vector<1x64xf32>
    %117 = vector.broadcast %116 : vector<1x64xf32> to vector<32x64xf32>
    %118 = arith.subf %104, %117 : vector<32x64xf32>
    %119 = arith.mulf %118, %118 : vector<32x64xf32>
    %cst_43 = arith.constant dense<0.000000e+00> : vector<64xf32>
    %120 = vector.multi_reduction <add>, %119, %cst_43 [0] : vector<32x64xf32> to vector<64xf32>
    %121 = vector.shape_cast %120 : vector<64xf32> to vector<1x64xf32>
    %122 = vector.broadcast %116 : vector<1x64xf32> to vector<32x64xf32>
    %123 = arith.subf %109, %122 : vector<32x64xf32>
    %124 = arith.mulf %123, %123 : vector<32x64xf32>
    %cst_44 = arith.constant dense<0.000000e+00> : vector<64xf32>
    %125 = vector.multi_reduction <add>, %124, %cst_44 [0] : vector<32x64xf32> to vector<64xf32>
    %126 = vector.shape_cast %125 : vector<64xf32> to vector<1x64xf32>
    %127 = arith.addf %121, %126 : vector<1x64xf32>
    %cst_45 = arith.constant 1.562500e-02 : f32
    %128 = vector.broadcast %cst_45 : f32 to vector<1x64xf32>
    %129 = arith.mulf %127, %128 : vector<1x64xf32>
    %cst_46 = arith.constant 9.99999974E-6 : f32
    %130 = vector.broadcast %cst_46 : f32 to vector<1x64xf32>
    %131 = arith.addf %129, %130 : vector<1x64xf32>
    %132 = math.rsqrt %131 : vector<1x64xf32>
    %c0_47 = arith.constant 0 : index
    %c0_48 = arith.constant 0 : index
    %133 = vector.load %arg9[%c0_47, %c0_48] : memref<1x64xf32, #tpu.memory_space<vmem>>, vector<1x64xf32>
    %134 = arith.mulf %132, %133 : vector<1x64xf32>
    %c0_49 = arith.constant 0 : index
    %c0_50 = arith.constant 0 : index
    %135 = vector.load %arg10[%c0_49, %c0_50] : memref<1x64xf32, #tpu.memory_space<vmem>>, vector<1x64xf32>
    %136 = arith.mulf %116, %134 : vector<1x64xf32>
    %137 = arith.subf %135, %136 : vector<1x64xf32>
    %138 = vector.broadcast %134 : vector<1x64xf32> to vector<32x64xf32>
    %139 = arith.mulf %104, %138 : vector<32x64xf32>
    %140 = vector.broadcast %137 : vector<1x64xf32> to vector<32x64xf32>
    %141 = arith.addf %139, %140 : vector<32x64xf32>
    %cst_51 = arith.constant 0.000000e+00 : f32
    %142 = vector.broadcast %cst_51 : f32 to vector<32x64xf32>
    %143 = arith.maximumf %141, %142 : vector<32x64xf32>
    %144 = vector.broadcast %134 : vector<1x64xf32> to vector<32x64xf32>
    %145 = arith.mulf %109, %144 : vector<32x64xf32>
    %146 = vector.broadcast %137 : vector<1x64xf32> to vector<32x64xf32>
    %147 = arith.addf %145, %146 : vector<32x64xf32>
    %cst_52 = arith.constant 0.000000e+00 : f32
    %148 = vector.broadcast %cst_52 : f32 to vector<32x64xf32>
    %149 = arith.maximumf %147, %148 : vector<32x64xf32>
    %150 = vector.extract_strided_slice %143 {offsets = [0, 0], sizes = [16, 64], strides = [1, 1]} : vector<32x64xf32> to vector<16x64xf32>
    %151 = vector.extract_strided_slice %149 {offsets = [0, 0], sizes = [16, 64], strides = [1, 1]} : vector<32x64xf32> to vector<16x64xf32>
    %152 = vector.extract_strided_slice %143 {offsets = [16, 0], sizes = [16, 64], strides = [1, 1]} : vector<32x64xf32> to vector<16x64xf32>
    %153 = vector.extract_strided_slice %149 {offsets = [16, 0], sizes = [16, 64], strides = [1, 1]} : vector<32x64xf32> to vector<16x64xf32>
    %c15_i32_53 = arith.constant 15 : i32
    %154 = tpu.dynamic_rotate %150 by %c15_i32_53 dim 0 : vector<16x64xf32>, i32 -> vector<16x64xf32>
    %cst_54 = arith.constant 0.000000e+00 : f32
    %155 = vector.shape_cast %18 : vector<16x1xi1> to vector<16x1xi1>
    %156 = vector.broadcast %155 : vector<16x1xi1> to vector<16x64xi1>
    %157 = vector.broadcast %cst_54 : f32 to vector<16x64xf32>
    %158 = arith.select %156, %154, %157 : vector<16x64xi1>, vector<16x64xf32>
    %c1_i32_55 = arith.constant 1 : i32
    %159 = tpu.dynamic_rotate %153 by %c1_i32_55 dim 0 : vector<16x64xf32>, i32 -> vector<16x64xf32>
    %cst_56 = arith.constant 0.000000e+00 : f32
    %160 = vector.shape_cast %20 : vector<16x1xi1> to vector<16x1xi1>
    %161 = vector.broadcast %160 : vector<16x1xi1> to vector<16x64xi1>
    %162 = vector.broadcast %cst_56 : f32 to vector<16x64xf32>
    %163 = arith.select %161, %159, %162 : vector<16x64xi1>, vector<16x64xf32>
    %164 = tpu.concatenate %151, %152, %153, %158 in 0 : vector<16x64xf32>, vector<16x64xf32>, vector<16x64xf32>, vector<16x64xf32> -> vector<64x64xf32>
    %165 = tpu.concatenate %150, %151, %152, %153 in 0 : vector<16x64xf32>, vector<16x64xf32>, vector<16x64xf32>, vector<16x64xf32> -> vector<64x64xf32>
    %166 = tpu.concatenate %163, %150, %151, %152 in 0 : vector<16x64xf32>, vector<16x64xf32>, vector<16x64xf32>, vector<16x64xf32> -> vector<64x64xf32>
    %c0_57 = arith.constant 0 : index
    %c0_58 = arith.constant 0 : index
    %167 = vector.load %arg11[%c0_57, %c0_58] : memref<192x2xbf16, #tpu.memory_space<vmem>>, vector<192x2xbf16>
    %168 = arith.truncf %164 : vector<64x64xf32> to vector<64x64xbf16>
    %169 = vector.extract_strided_slice %167 {offsets = [0, 0], sizes = [64, 2], strides = [1, 1]} : vector<192x2xbf16> to vector<64x2xbf16>
    %cst_59 = arith.constant dense<0.000000e+00> : vector<64x2xf32>
    %170 = tpu.matmul %168, %169, %cst_59 {dimension_numbers = #tpu.dot_dimension_numbers<[1], [0], [0], [1], [0, 0, 1, 1], [], []>} : vector<64x64xbf16>, vector<64x2xbf16>, vector<64x2xf32> -> vector<64x2xf32>
    %171 = arith.truncf %165 : vector<64x64xf32> to vector<64x64xbf16>
    %172 = vector.extract_strided_slice %167 {offsets = [64, 0], sizes = [64, 2], strides = [1, 1]} : vector<192x2xbf16> to vector<64x2xbf16>
    %cst_60 = arith.constant dense<0.000000e+00> : vector<64x2xf32>
    %173 = tpu.matmul %171, %172, %cst_60 {dimension_numbers = #tpu.dot_dimension_numbers<[1], [0], [0], [1], [0, 0, 1, 1], [], []>} : vector<64x64xbf16>, vector<64x2xbf16>, vector<64x2xf32> -> vector<64x2xf32>
    %174 = arith.addf %170, %173 : vector<64x2xf32>
    %175 = arith.truncf %166 : vector<64x64xf32> to vector<64x64xbf16>
    %176 = vector.extract_strided_slice %167 {offsets = [128, 0], sizes = [64, 2], strides = [1, 1]} : vector<192x2xbf16> to vector<64x2xbf16>
    %cst_61 = arith.constant dense<0.000000e+00> : vector<64x2xf32>
    %177 = tpu.matmul %175, %176, %cst_61 {dimension_numbers = #tpu.dot_dimension_numbers<[1], [0], [0], [1], [0, 0, 1, 1], [], []>} : vector<64x64xbf16>, vector<64x2xbf16>, vector<64x2xf32> -> vector<64x2xf32>
    %178 = arith.addf %174, %177 : vector<64x2xf32>
    %c0_62 = arith.constant 0 : index
    %c0_63 = arith.constant 0 : index
    %179 = vector.load %arg12[%c0_62, %c0_63] : memref<1x1xf32, #tpu.memory_space<vmem>>, vector<1x1xf32>
    %180 = vector.broadcast %179 : vector<1x1xf32> to vector<64x2xf32>
    %181 = arith.addf %178, %180 : vector<64x2xf32>
    %c0_64 = arith.constant 0 : index
    %c0_65 = arith.constant 0 : index
    %182 = vector.load %arg13[%c0_64, %c0_65] : memref<64x2xf32, #tpu.memory_space<vmem>>, vector<64x2xf32>
    tpu.vector_store %arg13[%c0_64, %c0_65], %181 {strides = array<i32>} : memref<64x2xf32, #tpu.memory_space<vmem>>, vector<64x2xf32>,
    return
  }
}

</mosaic_0001>

<llo_original>
// kernel: tpu_custom_call.1
$region0: #{tpu_custom_call.1}
  #allocation0 [shape = 'u32[]', space=smem, size = 0x4, offset = 0x4, fixed_abs, tag = 'smem constant byte address 0x4 - core index']
  #allocation1 [shape = 'u32[144,128]{1,0:T(1,128)}', space=vmem, size = 0x12000, scoped, tag = 'internal scratch']
  #allocation2 [shape = 'f32[1,1]{1,0:T(1,128)S(1)}', space=vmem, size = 0x200, scoped, tag = 'scoped memory for tpu_custom_call.1']
  %s0 = inlined_call_operand.vmem [shape: bf16[16,256], index: 0, kind: input, shape index: {}]
  %s1 = inlined_call_operand.vmem [shape: bf16[768,128], index: 1, kind: input, shape index: {}]
  %s2 = inlined_call_operand.hbm [shape: bf16[512,128], index: 2, kind: input, shape index: {}]
  %s3 = inlined_call_operand.vmem [shape: f32[1,128], index: 3, kind: input, shape index: {}]
  %s4 = inlined_call_operand.vmem [shape: f32[1,128], index: 4, kind: input, shape index: {}]
  %s5 = inlined_call_operand.vmem [shape: f32[1,128], index: 5, kind: input, shape index: {}]
  %s6 = inlined_call_operand.vmem [shape: bf16[384,64], index: 6, kind: input, shape index: {}]
  %s7 = inlined_call_operand.vmem [shape: bf16[256,64], index: 7, kind: input, shape index: {}]
  %s8 = inlined_call_operand.vmem [shape: f32[1,64], index: 8, kind: input, shape index: {}]
  %s9 = inlined_call_operand.vmem [shape: f32[1,64], index: 9, kind: input, shape index: {}]
  %s10 = inlined_call_operand.vmem [shape: f32[1,64], index: 10, kind: input, shape index: {}]
  %s11 = inlined_call_operand.vmem [shape: bf16[192,2], index: 11, kind: input, shape index: {}]
  %s12 = inlined_call_operand.<no memory space> [shape: f32[1,1], index: 12, kind: input, shape index: {}]
  %s13 = inlined_call_operand.vmem [shape: f32[64,2], index: 13, kind: output, shape index: {}]
  %s14 = sld [smem:[#allocation0]]
  $region66: #{tpu_custom_call.1} parent=0
    _
  %s16 = ssub.s32 1, %s14
  %s17 = scalar_select 0, %s16, %s14
  %v18 = vstv %s12
  %19 = vst [vmem:[#allocation2] sm:$0x1] %v18
  $region1: #{tpu_custom_call.1} parent=0
    #allocation3 [shape = 'u8[131072]{0}', space=vmem, size = 0x20000, scoped, tag = 'input window, operand 2, single buffered']
    #allocation4 [shape = 's32[1]{0}', space=sflag, size = 0x4, scoped, tag = 'scoped memory for tpu_custom_call.1']
    %20 = vsyncpa [#allocation4], 0
    // Predicated region
    $region2: #{tpu_custom_call.1} parent=1 // pred_check
      _
    $region3: #{tpu_custom_call.1} parent=1 // pred_check_branch
      %22 = sbr.rel (0) target = $region5
    $region4: #{tpu_custom_call.1} parent=1 // pred_region
      _
    $region5: #{tpu_custom_call.1} parent=1 // pred_fallthru
      _
    // Predicated region
    $region6: #{tpu_custom_call.1} parent=1 // pred_check
      _
    $region7: #{tpu_custom_call.1} parent=1 // pred_check_branch
      %24 = sbr.rel (0) target = $region9
    $region8: #{tpu_custom_call.1} parent=1 // pred_region
      _
    $region9: #{tpu_custom_call.1} parent=1 // pred_fallthru
      _
    // Predicated region
    $region10: #{tpu_custom_call.1} parent=1 // pred_check
      _
    $region11: #{tpu_custom_call.1} parent=1 // pred_check_branch
      %26 = sbr.rel (0) target = $region13
    $region12: #{tpu_custom_call.1} parent=1 // pred_region
      %s28 = ssub.s32 4096, 4096
      %29 = vsyncadd [#allocation4], %s28
      %s30 = sshll.u32 [#allocation3], 4
      %s31 = int_to_ptr.vmem [resolvable:$true] %s30
      %36 = dma.hbm_to_vmem [thread:$0]  %s2, 4096, %s31, [#allocation4], 64, 64, 4
    $region13: #{tpu_custom_call.1} parent=1 // pred_fallthru
      _
    // Predicated region
    $region14: #{tpu_custom_call.1} parent=1 // pred_check
      _
    $region15: #{tpu_custom_call.1} parent=1 // pred_check_branch
      %38 = sbr.rel (0) target = $region17
    $region16: #{tpu_custom_call.1} parent=1 // pred_region
      _
    $region17: #{tpu_custom_call.1} parent=1 // pred_fallthru
      _
    // Predicated region
    $region18: #{tpu_custom_call.1} parent=1 // pred_check
      _
    $region19: #{tpu_custom_call.1} parent=1 // pred_check_branch
      %40 = sbr.rel (0) target = $region21
    $region20: #{tpu_custom_call.1} parent=1 // pred_region
      _
    $region21: #{tpu_custom_call.1} parent=1 // pred_fallthru
      _
    // Predicated region
    $region22: #{tpu_custom_call.1} parent=1 // pred_check
      _
    $region23: #{tpu_custom_call.1} parent=1 // pred_check_branch
      %42 = sbr.rel (0) target = $region25
    $region24: #{tpu_custom_call.1} parent=1 // pred_region
      _
    $region25: #{tpu_custom_call.1} parent=1 // pred_fallthru
      _
    // Predicated region
    $region26: #{tpu_custom_call.1} parent=1 // pred_check
      _
    $region27: #{tpu_custom_call.1} parent=1 // pred_check_branch
      %44 = sbr.rel (0) target = $region29
    $region28: #{tpu_custom_call.1} parent=1 // pred_region
      _
    $region29: #{tpu_custom_call.1} parent=1 // pred_fallthru
      _
    // Predicated region
    $region30: #{tpu_custom_call.1} parent=1 // pred_check
      _
    $region31: #{tpu_custom_call.1} parent=1 // pred_check_branch
      %46 = sbr.rel (0) target = $region33
    $region32: #{tpu_custom_call.1} parent=1 // pred_region
      _
    $region33: #{tpu_custom_call.1} parent=1 // pred_fallthru
      _
    // Predicated region
    $region34: #{tpu_custom_call.1} parent=1 // pred_check
      _
    $region35: #{tpu_custom_call.1} parent=1 // pred_check_branch
      %48 = sbr.rel (0) target = $region37
    $region36: #{tpu_custom_call.1} parent=1 // pred_region
      _
    $region37: #{tpu_custom_call.1} parent=1 // pred_fallthru
      _
    // Predicated region
    $region38: #{tpu_custom_call.1} parent=1 // pred_check
      _
    $region39: #{tpu_custom_call.1} parent=1 // pred_check_branch
      %50 = sbr.rel (0) target = $region41
    $region40: #{tpu_custom_call.1} parent=1 // pred_region
      _
    $region41: #{tpu_custom_call.1} parent=1 // pred_fallthru
      _
    // Predicated region
    $region42: #{tpu_custom_call.1} parent=1 // pred_check
      _
    $region43: #{tpu_custom_call.1} parent=1 // pred_check_branch
      %52 = sbr.rel (0) target = $region45
    $region44: #{tpu_custom_call.1} parent=1 // pred_region
      _
    $region45: #{tpu_custom_call.1} parent=1 // pred_fallthru
      _
    // Predicated region
    $region46: #{tpu_custom_call.1} parent=1 // pred_check
      _
    $region47: #{tpu_custom_call.1} parent=1 // pred_check_branch
      %54 = sbr.rel (0) target = $region49
    $region48: #{tpu_custom_call.1} parent=1 // pred_region
      _
    $region49: #{tpu_custom_call.1} parent=1 // pred_fallthru
      _
    // Predicated region
    $region50: #{tpu_custom_call.1} parent=1 // pred_check
      _
    $region51: #{tpu_custom_call.1} parent=1 // pred_check_branch
      %56 = sbr.rel (0) target = $region53
    $region52: #{tpu_custom_call.1} parent=1 // pred_region
      _
    $region53: #{tpu_custom_call.1} parent=1 // pred_fallthru
      _
    // Predicated region
    $region54: #{tpu_custom_call.1} parent=1 // pred_check
      _
    $region55: #{tpu_custom_call.1} parent=1 // pred_check_branch
      %58 = sbr.rel (0) target = $region57
    $region56: #{tpu_custom_call.1} parent=1 // pred_region
      %59 = dma.done [#allocation4], 4096
    $region57: #{tpu_custom_call.1} parent=1 // pred_fallthru
      _
    %v61 = vlaneseq
    %v62 = vshrl.u32 %v61, 7
    %v63 = vadd.s32 %v62, 8
    %vm64 = vcmp.lt.s32.totalorder %v62, 0
    %v65 = vsub.s32 0, %v62
    %v66 = vsel %vm64, %v65, %v62
    %v67 = vshrl.u32 %v66, 3
    %v68 = vand.u32 %v66, 7
    %v69 = vsub.s32 0, %v68
    %v70 = vsel %vm64, %v69, %v68
    %vm71 = vcmp.lt.s32.totalorder %v63, 0
    %v72 = vsub.s32 0, %v63
    %v73 = vsel %vm71, %v72, %v63
    %v74 = vshrl.u32 %v73, 3
    %v75 = vand.u32 %v73, 7
    %v76 = vsub.s32 0, %v75
    %v77 = vsel %vm71, %v76, %v75
    %vm78 = vcmp.ne.s32.totalorder %v70, 0
    %vm79 = vcmp.ne.s32.totalorder %v77, 0
    %vm80 = vcmp.lt.s32.totalorder %v70, 0
    %vm81 = vcmp.lt.s32.totalorder %v77, 0
    %vm82 = vmand %vm80, %vm78
    %vm83 = vmand %vm81, %vm79
    %v84 = vadd.s32 %v70, 8
    %v85 = vadd.s32 %v77, 8
    %v86 = vsel %vm82, %v84, %v70
    %v87 = vsel %vm83, %v85, %v77
    %vm88 = vcmp.ne.s32.totalorder %v86, 7
    %vm89 = vcmp.ne.s32.totalorder %v87, 7
    %vm90 = vcmp.ne.s32.totalorder %v86, 0
    %vm91 = vcmp.ne.s32.totalorder %v87, 0
    %v92 = vld [vmem:[%s0] sm:$0xff]
    %v93 = vld [vmem:[%s0 + $0x8] sm:$0xff]
    %v94 = vunpack.c.l.bf16 %v92
    %v95 = vunpack.c.h.bf16 %v92
    %v96 = vunpack.c.l.bf16 %v93
    %v97 = vunpack.c.h.bf16 %v93
    %v98 = vrot.slane %v94, 1
    %v99 = vrot.slane %v95, 1
    %v100 = vrot.slane %v96, 1
    %v101 = vrot.slane %v97, 1
    %vm102 = vcmp.lt.s32.totalorder %v62, 7
    %v103 = vsel %vm102, %v98, %v100
    %v104 = vsel %vm102, %v99, %v101
    %v105 = vsel %vm102, %v100, %v98
    %v106 = vsel %vm102, %v101, %v99
    %v107 = vsel %vm88, 1, 0
    %v108 = vsel %vm89, 1, 0
    %vm109 = vcmp.eq.s32.totalorder %v107, 1
    %vm110 = vcmp.eq.s32.totalorder %v108, 1
    %v111 = vsel %vm109, %v103, 0.0
    %v112 = vsel %vm109, %v104, 0.0
    %v113 = vsel %vm110, %v105, 0.0
    %v114 = vsel %vm110, %v106, 0.0
    %v115 = vrot.slane %v94, 7
    %v116 = vrot.slane %v95, 7
    %v117 = vrot.slane %v96, 7
    %v118 = vrot.slane %v97, 7
    %vm119 = vcmp.lt.s32.totalorder %v62, 1
    %v120 = vsel %vm119, %v115, %v117
    %v121 = vsel %vm119, %v116, %v118
    %v122 = vsel %vm119, %v117, %v115
    %v123 = vsel %vm119, %v118, %v116
    %v124 = vsel %vm90, 1, 0
    %v125 = vsel %vm91, 1, 0
    %vm126 = vcmp.eq.s32.totalorder %v124, 1
    %vm127 = vcmp.eq.s32.totalorder %v125, 1
    %v128 = vsel %vm126, %v122, 0.0
    %v129 = vsel %vm126, %v123, 0.0
    %v130 = vsel %vm127, %v120, 0.0
    %v131 = vsel %vm127, %v121, 0.0
    %v132 = vpack.c.bf16 %v113, %v111
    %v133 = vpack.c.bf16 %v114, %v112
    %v134 = vpack.c.bf16 %v96, %v94
    %v135 = vpack.c.bf16 %v97, %v95
    %v136 = vpack.c.bf16 %v130, %v128
    %v137 = vpack.c.bf16 %v131, %v129
    %v138 = vld [vmem:[%s3] sm:$0x1]
    %v139 = vld [vmem:[%s1] sm:$0xf]
    %v140 = vld [vmem:[%s1 + $0x4] sm:$0xf]
    %v141 = vld [vmem:[%s1 + $0x8] sm:$0xf]
    %v142 = vld [vmem:[%s1 + $0xc] sm:$0xf]
    %v143 = vld [vmem:[%s1 + $0x10] sm:$0xf]
    %v144 = vld [vmem:[%s1 + $0x14] sm:$0xf]
    %v145 = vld [vmem:[%s1 + $0x18] sm:$0xf]
    %v146 = vld [vmem:[%s1 + $0x1c] sm:$0xf]
    %v147 = vld [vmem:[%s1 + $0x20] sm:$0xf]
    %v148 = vld [vmem:[%s1 + $0x24] sm:$0xf]
    %v149 = vld [vmem:[%s1 + $0x28] sm:$0xf]
    %v150 = vld [vmem:[%s1 + $0x2c] sm:$0xf]
    %v151 = vld [vmem:[%s1 + $0x30] sm:$0xf]
    %v152 = vld [vmem:[%s1 + $0x34] sm:$0xf]
    %v153 = vld [vmem:[%s1 + $0x38] sm:$0xf]
    %v154 = vld [vmem:[%s1 + $0x3c] sm:$0xf]
    %v155 = vld [vmem:[%s1 + $0x40] sm:$0xf]
    %v156 = vld [vmem:[%s1 + $0x44] sm:$0xf]
    %v157 = vld [vmem:[%s1 + $0x48] sm:$0xf]
    %v158 = vld [vmem:[%s1 + $0x4c] sm:$0xf]
    %v159 = vld [vmem:[%s1 + $0x50] sm:$0xf]
    %v160 = vld [vmem:[%s1 + $0x54] sm:$0xf]
    %v161 = vld [vmem:[%s1 + $0x58] sm:$0xf]
    %v162 = vld [vmem:[%s1 + $0x5c] sm:$0xf]
    %v163 = vld [vmem:[%s1 + $0x60] sm:$0xf]
    %v164 = vld [vmem:[%s1 + $0x64] sm:$0xf]
    %v165 = vld [vmem:[%s1 + $0x68] sm:$0xf]
    %v166 = vld [vmem:[%s1 + $0x6c] sm:$0xf]
    %v167 = vld [vmem:[%s1 + $0x70] sm:$0xf]
    %v168 = vld [vmem:[%s1 + $0x74] sm:$0xf]
    %v169 = vld [vmem:[%s1 + $0x78] sm:$0xf]
    %v170 = vld [vmem:[%s1 + $0x7c] sm:$0xf]
    %v171 = vld [vmem:[%s1 + $0x80] sm:$0xf]
    %v172 = vld [vmem:[%s1 + $0x84] sm:$0xf]
    %v173 = vld [vmem:[%s1 + $0x88] sm:$0xf]
    %v174 = vld [vmem:[%s1 + $0x8c] sm:$0xf]
    %v175 = vld [vmem:[%s1 + $0x90] sm:$0xf]
    %v176 = vld [vmem:[%s1 + $0x94] sm:$0xf]
    %v177 = vld [vmem:[%s1 + $0x98] sm:$0xf]
    %v178 = vld [vmem:[%s1 + $0x9c] sm:$0xf]
    %v179 = vld [vmem:[%s1 + $0xa0] sm:$0xf]
    %v180 = vld [vmem:[%s1 + $0xa4] sm:$0xf]
    %v181 = vld [vmem:[%s1 + $0xa8] sm:$0xf]
    %v182 = vld [vmem:[%s1 + $0xac] sm:$0xf]
    %v183 = vld [vmem:[%s1 + $0xb0] sm:$0xf]
    %v184 = vld [vmem:[%s1 + $0xb4] sm:$0xf]
    %v185 = vld [vmem:[%s1 + $0xb8] sm:$0xf]
    %v186 = vld [vmem:[%s1 + $0xbc] sm:$0xf]
    %v187 = vld [vmem:[%s1 + $0xc0] sm:$0xf]
    %v188 = vld [vmem:[%s1 + $0xc4] sm:$0xf]
    %v189 = vld [vmem:[%s1 + $0xc8] sm:$0xf]
    %v190 = vld [vmem:[%s1 + $0xcc] sm:$0xf]
    %v191 = vld [vmem:[%s1 + $0xd0] sm:$0xf]
    %v192 = vld [vmem:[%s1 + $0xd4] sm:$0xf]
    %v193 = vld [vmem:[%s1 + $0xd8] sm:$0xf]
    %v194 = vld [vmem:[%s1 + $0xdc] sm:$0xf]
    %v195 = vld [vmem:[%s1 + $0xe0] sm:$0xf]
    %v196 = vld [vmem:[%s1 + $0xe4] sm:$0xf]
    %v197 = vld [vmem:[%s1 + $0xe8] sm:$0xf]
    %v198 = vld [vmem:[%s1 + $0xec] sm:$0xf]
    %v199 = vld [vmem:[%s1 + $0xf0] sm:$0xf]
    %v200 = vld [vmem:[%s1 + $0xf4] sm:$0xf]
    %v201 = vld [vmem:[%s1 + $0xf8] sm:$0xf]
    %v202 = vld [vmem:[%s1 + $0xfc] sm:$0xf]
    %v203 = vld [vmem:[%s1 + $0x100] sm:$0xf]
    %v204 = vld [vmem:[%s1 + $0x104] sm:$0xf]
    %v205 = vld [vmem:[%s1 + $0x108] sm:$0xf]
    %v206 = vld [vmem:[%s1 + $0x10c] sm:$0xf]
    %v207 = vld [vmem:[%s1 + $0x110] sm:$0xf]
    %v208 = vld [vmem:[%s1 + $0x114] sm:$0xf]
    %v209 = vld [vmem:[%s1 + $0x118] sm:$0xf]
    %v210 = vld [vmem:[%s1 + $0x11c] sm:$0xf]
    %v211 = vld [vmem:[%s1 + $0x120] sm:$0xf]
    %v212 = vld [vmem:[%s1 + $0x124] sm:$0xf]
    %v213 = vld [vmem:[%s1 + $0x128] sm:$0xf]
    %v214 = vld [vmem:[%s1 + $0x12c] sm:$0xf]
    %v215 = vld [vmem:[%s1 + $0x130] sm:$0xf]
    %v216 = vld [vmem:[%s1 + $0x134] sm:$0xf]
    %v217 = vld [vmem:[%s1 + $0x138] sm:$0xf]
    %v218 = vld [vmem:[%s1 + $0x13c] sm:$0xf]
    %v219 = vld [vmem:[%s1 + $0x140] sm:$0xf]
    %v220 = vld [vmem:[%s1 + $0x144] sm:$0xf]
    %v221 = vld [vmem:[%s1 + $0x148] sm:$0xf]
    %v222 = vld [vmem:[%s1 + $0x14c] sm:$0xf]
    %v223 = vld [vmem:[%s1 + $0x150] sm:$0xf]
    %v224 = vld [vmem:[%s1 + $0x154] sm:$0xf]
    %v225 = vld [vmem:[%s1 + $0x158] sm:$0xf]
    %v226 = vld [vmem:[%s1 + $0x15c] sm:$0xf]
    %v227 = vld [vmem:[%s1 + $0x160] sm:$0xf]
    %v228 = vld [vmem:[%s1 + $0x164] sm:$0xf]
    %v229 = vld [vmem:[%s1 + $0x168] sm:$0xf]
    %v230 = vld [vmem:[%s1 + $0x16c] sm:$0xf]
    %v231 = vld [vmem:[%s1 + $0x170] sm:$0xf]
    %v232 = vld [vmem:[%s1 + $0x174] sm:$0xf]
    %v233 = vld [vmem:[%s1 + $0x178] sm:$0xf]
    %v234 = vld [vmem:[%s1 + $0x17c] sm:$0xf]
    %v236 = vlaneseq
    %v237 = vshrl.u32 %v236, 7
    %v238 = vsub.s32 0, %v237
    %v239 = vrot.slane %v138, %v238
    %v337 = vunpack.c.l.b16 %v139
    %v338 = vunpack.c.l.b16 %v140
    %v339 = vunpack.c.l.b16 %v141
    %v340 = vunpack.c.l.b16 %v142
    %v341 = vunpack.c.l.b16 %v143
    %v342 = vunpack.c.l.b16 %v144
    %v343 = vunpack.c.l.b16 %v145
    %v344 = vunpack.c.l.b16 %v146
    %v345 = vunpack.c.l.b16 %v147
    %v346 = vunpack.c.l.b16 %v148
    %v347 = vunpack.c.l.b16 %v149
    %v348 = vunpack.c.l.b16 %v150
    %v349 = vunpack.c.l.b16 %v151
    %v350 = vunpack.c.l.b16 %v152
    %v351 = vunpack.c.l.b16 %v153
    %v352 = vunpack.c.l.b16 %v154
    %v353 = vunpack.c.l.b16 %v155
    %v354 = vunpack.c.l.b16 %v156
    %v355 = vunpack.c.l.b16 %v157
    %v356 = vunpack.c.l.b16 %v158
    %v357 = vunpack.c.l.b16 %v159
    %v358 = vunpack.c.l.b16 %v160
    %v359 = vunpack.c.l.b16 %v161
    %v360 = vunpack.c.l.b16 %v162
    %v361 = vunpack.c.l.b16 %v163
    %v362 = vunpack.c.l.b16 %v164
    %v363 = vunpack.c.l.b16 %v165
    %v364 = vunpack.c.l.b16 %v166
    %v365 = vunpack.c.l.b16 %v167
    %v366 = vunpack.c.l.b16 %v168
    %v367 = vunpack.c.l.b16 %v169
    %v368 = vunpack.c.l.b16 %v170
    %v369 = vunpack.c.l.b16 %v171
    %v370 = vunpack.c.l.b16 %v172
    %v371 = vunpack.c.l.b16 %v173
    %v372 = vunpack.c.l.b16 %v174
    %v373 = vunpack.c.l.b16 %v175
    %v374 = vunpack.c.l.b16 %v176
    %v375 = vunpack.c.l.b16 %v177
    %v376 = vunpack.c.l.b16 %v178
    %v377 = vunpack.c.l.b16 %v179
    %v378 = vunpack.c.l.b16 %v180
    %v379 = vunpack.c.l.b16 %v181
    %v380 = vunpack.c.l.b16 %v182
    %v381 = vunpack.c.l.b16 %v183
    %v382 = vunpack.c.l.b16 %v184
    %v383 = vunpack.c.l.b16 %v185
    %v384 = vunpack.c.l.b16 %v186
    %v385 = vunpack.c.l.b16 %v187
    %v386 = vunpack.c.l.b16 %v188
    %v387 = vunpack.c.l.b16 %v189
    %v388 = vunpack.c.l.b16 %v190
    %v389 = vunpack.c.l.b16 %v191
    %v390 = vunpack.c.l.b16 %v192
    %v391 = vunpack.c.l.b16 %v193
    %v392 = vunpack.c.l.b16 %v194
    %v393 = vunpack.c.l.b16 %v195
    %v394 = vunpack.c.l.b16 %v196
    %v395 = vunpack.c.l.b16 %v197
    %v396 = vunpack.c.l.b16 %v198
    %v397 = vunpack.c.l.b16 %v199
    %v398 = vunpack.c.l.b16 %v200
    %v399 = vunpack.c.l.b16 %v201
    %v400 = vunpack.c.l.b16 %v202
    %v401 = vunpack.c.l.b16 %v203
    %v402 = vunpack.c.l.b16 %v204
    %v403 = vunpack.c.l.b16 %v205
    %v404 = vunpack.c.l.b16 %v206
    %v405 = vunpack.c.l.b16 %v207
    %v406 = vunpack.c.l.b16 %v208
    %v407 = vunpack.c.l.b16 %v209
    %v408 = vunpack.c.l.b16 %v210
    %v409 = vunpack.c.l.b16 %v211
    %v410 = vunpack.c.l.b16 %v212
    %v411 = vunpack.c.l.b16 %v213
    %v412 = vunpack.c.l.b16 %v214
    %v413 = vunpack.c.l.b16 %v215
    %v414 = vunpack.c.l.b16 %v216
    %v415 = vunpack.c.l.b16 %v217
    %v416 = vunpack.c.l.b16 %v218
    %v417 = vunpack.c.l.b16 %v219
    %v418 = vunpack.c.l.b16 %v220
    %v419 = vunpack.c.l.b16 %v221
    %v420 = vunpack.c.l.b16 %v222
    %v421 = vunpack.c.l.b16 %v223
    %v422 = vunpack.c.l.b16 %v224
    %v423 = vunpack.c.l.b16 %v225
    %v424 = vunpack.c.l.b16 %v226
    %v425 = vunpack.c.l.b16 %v227
    %v426 = vunpack.c.l.b16 %v228
    %v427 = vunpack.c.l.b16 %v229
    %v428 = vunpack.c.l.b16 %v230
    %v429 = vunpack.c.l.b16 %v231
    %v430 = vunpack.c.l.b16 %v232
    %v431 = vunpack.c.l.b16 %v233
    %v432 = vunpack.c.l.b16 %v234
    %v433 = vpack.c.b16 %v338, %v337
    %v434 = vpack.c.b16 %v340, %v339
    %v435 = vpack.c.b16 %v342, %v341
    %v436 = vpack.c.b16 %v344, %v343
    %v437 = vpack.c.b16 %v346, %v345
    %v438 = vpack.c.b16 %v348, %v347
    %v439 = vpack.c.b16 %v350, %v349
    %v440 = vpack.c.b16 %v352, %v351
    %v441 = vpack.c.b16 %v354, %v353
    %v442 = vpack.c.b16 %v356, %v355
    %v443 = vpack.c.b16 %v358, %v357
    %v444 = vpack.c.b16 %v360, %v359
    %v445 = vpack.c.b16 %v362, %v361
    %v446 = vpack.c.b16 %v364, %v363
    %v447 = vpack.c.b16 %v366, %v365
    %v448 = vpack.c.b16 %v368, %v367
    %v449 = vpack.c.b16 %v370, %v369
    %v450 = vpack.c.b16 %v372, %v371
    %v451 = vpack.c.b16 %v374, %v373
    %v452 = vpack.c.b16 %v376, %v375
    %v453 = vpack.c.b16 %v378, %v377
    %v454 = vpack.c.b16 %v380, %v379
    %v455 = vpack.c.b16 %v382, %v381
    %v456 = vpack.c.b16 %v384, %v383
    %v457 = vpack.c.b16 %v386, %v385
    %v458 = vpack.c.b16 %v388, %v387
    %v459 = vpack.c.b16 %v390, %v389
    %v460 = vpack.c.b16 %v392, %v391
    %v461 = vpack.c.b16 %v394, %v393
    %v462 = vpack.c.b16 %v396, %v395
    %v463 = vpack.c.b16 %v398, %v397
    %v464 = vpack.c.b16 %v400, %v399
    %v465 = vpack.c.b16 %v402, %v401
    %v466 = vpack.c.b16 %v404, %v403
    %v467 = vpack.c.b16 %v406, %v405
    %v468 = vpack.c.b16 %v408, %v407
    %v469 = vpack.c.b16 %v410, %v409
    %v470 = vpack.c.b16 %v412, %v411
    %v471 = vpack.c.b16 %v414, %v413
    %v472 = vpack.c.b16 %v416, %v415
    %v473 = vpack.c.b16 %v418, %v417
    %v474 = vpack.c.b16 %v420, %v419
    %v475 = vpack.c.b16 %v422, %v421
    %v476 = vpack.c.b16 %v424, %v423
    %v477 = vpack.c.b16 %v426, %v425
    %v478 = vpack.c.b16 %v428, %v427
    %v479 = vpack.c.b16 %v430, %v429
    %v480 = vpack.c.b16 %v432, %v431
    %529 = vmatprep.subr.bf16.mxu0 0
    %530 = vmatpush1.bf16.msra.mxu0 %v440
    %531 = vmatprep.subr.bf16.mxu0 0
    %532 = vmatpush1.bf16.msra.mxu0 %v439
    %533 = vmatprep.subr.bf16.mxu0 0
    %534 = vmatpush1.bf16.msra.mxu0 %v438
    %535 = vmatprep.subr.bf16.mxu0 0
    %536 = vmatpush1.bf16.msra.mxu0 %v437
    %537 = vmatprep.subr.bf16.mxu0 0
    %538 = vmatpush1.bf16.msra.mxu0 %v436
    %539 = vmatprep.subr.bf16.mxu0 0
    %540 = vmatpush1.bf16.msra.mxu0 %v435
    %541 = vmatprep.subr.bf16.mxu0 0
    %542 = vmatpush1.bf16.msra.mxu0 %v434
    %543 = vmatprep.subr.bf16.mxu0 0
    %544 = vmatpush1.bf16.msra.mxu0 %v433
    %545 = vmatprep.subr.bf16.mxu0 0
    %546 = vmatpush2.bf16.msra.mxu0 %v448
    %547 = vmatprep.subr.bf16.mxu0 0
    %548 = vmatpush2.bf16.msra.mxu0 %v447
    %549 = vmatprep.subr.bf16.mxu0 0
    %550 = vmatpush2.bf16.msra.mxu0 %v446
    %551 = vmatprep.subr.bf16.mxu0 0
    %552 = vmatpush2.bf16.msra.mxu0 %v445
    %553 = vmatprep.subr.bf16.mxu0 0
    %554 = vmatpush2.bf16.msra.mxu0 %v444
    %555 = vmatprep.subr.bf16.mxu0 0
    %556 = vmatpush2.bf16.msra.mxu0 %v443
    %557 = vmatprep.subr.bf16.mxu0 0
    %558 = vmatpush2.bf16.msra.mxu0 %v442
    %559 = vmatprep.subr.bf16.mxu0 0
    %560 = vmatpush2.bf16.msra.mxu0 %v441
    %561 = vmatprep.mubr.bf16.mxu0 %v133
    %562 = vmatmul.mubr.bf16.gmra.mxu0 %v132
    %v563 = vpop.f32.mrf.mxu0
    %v564 = vadd.f32 %v239, %v563
    %v565 = vpop.f32.mrf.mxu0
    %v566 = vpop.f32.mrf.mxu0
    %v567 = vadd.f32 %v239, %v566
    %v568 = vpop.f32.mrf.mxu0
    %569 = vdwg.mxu0
    %570 = vmatprep.subr.bf16.mxu0 0
    %571 = vmatpush1.bf16.msra.mxu0 %v456
    %572 = vmatprep.subr.bf16.mxu0 0
    %573 = vmatpush1.bf16.msra.mxu0 %v455
    %574 = vmatprep.subr.bf16.mxu0 0
    %575 = vmatpush1.bf16.msra.mxu0 %v454
    %576 = vmatprep.subr.bf16.mxu0 0
    %577 = vmatpush1.bf16.msra.mxu0 %v453
    %578 = vmatprep.subr.bf16.mxu0 0
    %579 = vmatpush1.bf16.msra.mxu0 %v452
    %580 = vmatprep.subr.bf16.mxu0 0
    %581 = vmatpush1.bf16.msra.mxu0 %v451
    %582 = vmatprep.subr.bf16.mxu0 0
    %583 = vmatpush1.bf16.msra.mxu0 %v450
    %584 = vmatprep.subr.bf16.mxu0 0
    %585 = vmatpush1.bf16.msra.mxu0 %v449
    %586 = vmatprep.subr.bf16.mxu0 0
    %587 = vmatpush2.bf16.msra.mxu0 %v464
    %588 = vmatprep.subr.bf16.mxu0 0
    %589 = vmatpush2.bf16.msra.mxu0 %v463
    %590 = vmatprep.subr.bf16.mxu0 0
    %591 = vmatpush2.bf16.msra.mxu0 %v462
    %592 = vmatprep.subr.bf16.mxu0 0
    %593 = vmatpush2.bf16.msra.mxu0 %v461
    %594 = vmatprep.subr.bf16.mxu0 0
    %595 = vmatpush2.bf16.msra.mxu0 %v460
    %596 = vmatprep.subr.bf16.mxu0 0
    %597 = vmatpush2.bf16.msra.mxu0 %v459
    %598 = vmatprep.subr.bf16.mxu0 0
    %599 = vmatpush2.bf16.msra.mxu0 %v458
    %600 = vmatprep.subr.bf16.mxu0 0
    %601 = vmatpush2.bf16.msra.mxu0 %v457
    %602 = vmatprep.mubr.bf16.mxu0 %v135
    %603 = vmatmul.mubr.bf16.gmra.mxu0 %v134
    %v604 = vpop.f32.mrf.mxu0
    %v605 = vadd.f32 %v564, %v604
    %v606 = vpop.f32.mrf.mxu0
    %v607 = vpop.f32.mrf.mxu0
    %v608 = vadd.f32 %v567, %v607
    %v609 = vpop.f32.mrf.mxu0
    %610 = vdwg.mxu0
    %611 = vmatprep.subr.bf16.mxu0 0
    %612 = vmatpush1.bf16.msra.mxu0 %v472
    %613 = vmatprep.subr.bf16.mxu0 0
    %614 = vmatpush1.bf16.msra.mxu0 %v471
    %615 = vmatprep.subr.bf16.mxu0 0
    %616 = vmatpush1.bf16.msra.mxu0 %v470
    %617 = vmatprep.subr.bf16.mxu0 0
    %618 = vmatpush1.bf16.msra.mxu0 %v469
    %619 = vmatprep.subr.bf16.mxu0 0
    %620 = vmatpush1.bf16.msra.mxu0 %v468
    %621 = vmatprep.subr.bf16.mxu0 0
    %622 = vmatpush1.bf16.msra.mxu0 %v467
    %623 = vmatprep.subr.bf16.mxu0 0
    %624 = vmatpush1.bf16.msra.mxu0 %v466
    %625 = vmatprep.subr.bf16.mxu0 0
    %626 = vmatpush1.bf16.msra.mxu0 %v465
    %627 = vmatprep.subr.bf16.mxu0 0
    %628 = vmatpush2.bf16.msra.mxu0 %v480
    %629 = vmatprep.subr.bf16.mxu0 0
    %630 = vmatpush2.bf16.msra.mxu0 %v479
    %631 = vmatprep.subr.bf16.mxu0 0
    %632 = vmatpush2.bf16.msra.mxu0 %v478
    %633 = vmatprep.subr.bf16.mxu0 0
    %634 = vmatpush2.bf16.msra.mxu0 %v477
    %635 = vmatprep.subr.bf16.mxu0 0
    %636 = vmatpush2.bf16.msra.mxu0 %v476
    %637 = vmatprep.subr.bf16.mxu0 0
    %638 = vmatpush2.bf16.msra.mxu0 %v475
    %639 = vmatprep.subr.bf16.mxu0 0
    %640 = vmatpush2.bf16.msra.mxu0 %v474
    %641 = vmatprep.subr.bf16.mxu0 0
    %642 = vmatpush2.bf16.msra.mxu0 %v473
    %643 = vmatprep.mubr.bf16.mxu0 %v137
    %644 = vmatmul.mubr.bf16.gmra.mxu0 %v136
    %v645 = vpop.f32.mrf.mxu0
    %v646 = vadd.f32 %v605, %v645
    %v647 = vpop.f32.mrf.mxu0
    %v648 = vpop.f32.mrf.mxu0
    %v649 = vadd.f32 %v608, %v648
    %v650 = vpop.f32.mrf.mxu0
    %651 = vdwg.mxu0
    %v652 = vld [vmem:[#allocation3] sm:$0xf]
    %v653 = vld [vmem:[#allocation3 + $0x4] sm:$0xf]
    %v654 = vld [vmem:[#allocation3 + $0x8] sm:$0xf]
    %v655 = vld [vmem:[#allocation3 + $0xc] sm:$0xf]
    %v656 = vld [vmem:[#allocation3 + $0x10] sm:$0xf]
    %v657 = vld [vmem:[#allocation3 + $0x14] sm:$0xf]
    %v658 = vld [vmem:[#allocation3 + $0x18] sm:$0xf]
    %v659 = vld [vmem:[#allocation3 + $0x1c] sm:$0xf]
    %v660 = vld [vmem:[#allocation3 + $0x20] sm:$0xf]
    %v661 = vld [vmem:[#allocation3 + $0x24] sm:$0xf]
    %v662 = vld [vmem:[#allocation3 + $0x28] sm:$0xf]
    %v663 = vld [vmem:[#allocation3 + $0x2c] sm:$0xf]
    %v664 = vld [vmem:[#allocation3 + $0x30] sm:$0xf]
    %v665 = vld [vmem:[#allocation3 + $0x34] sm:$0xf]
    %v666 = vld [vmem:[#allocation3 + $0x38] sm:$0xf]
    %v667 = vld [vmem:[#allocation3 + $0x3c] sm:$0xf]
    %v668 = vld [vmem:[#allocation3 + $0x40] sm:$0xf]
    %v669 = vld [vmem:[#allocation3 + $0x44] sm:$0xf]
    %v670 = vld [vmem:[#allocation3 + $0x48] sm:$0xf]
    %v671 = vld [vmem:[#allocation3 + $0x4c] sm:$0xf]
    %v672 = vld [vmem:[#allocation3 + $0x50] sm:$0xf]
    %v673 = vld [vmem:[#allocation3 + $0x54] sm:$0xf]
    %v674 = vld [vmem:[#allocation3 + $0x58] sm:$0xf]
    %v675 = vld [vmem:[#allocation3 + $0x5c] sm:$0xf]
    %v676 = vld [vmem:[#allocation3 + $0x60] sm:$0xf]
    %v677 = vld [vmem:[#allocation3 + $0x64] sm:$0xf]
    %v678 = vld [vmem:[#allocation3 + $0x68] sm:$0xf]
    %v679 = vld [vmem:[#allocation3 + $0x6c] sm:$0xf]
    %v680 = vld [vmem:[#allocation3 + $0x70] sm:$0xf]
    %v681 = vld [vmem:[#allocation3 + $0x74] sm:$0xf]
    %v682 = vld [vmem:[#allocation3 + $0x78] sm:$0xf]
    %v683 = vld [vmem:[#allocation3 + $0x7c] sm:$0xf]
    %v684 = vld [vmem:[#allocation3 + $0x80] sm:$0xf]
    %v685 = vld [vmem:[#allocation3 + $0x84] sm:$0xf]
    %v686 = vld [vmem:[#allocation3 + $0x88] sm:$0xf]
    %v687 = vld [vmem:[#allocation3 + $0x8c] sm:$0xf]
    %v688 = vld [vmem:[#allocation3 + $0x90] sm:$0xf]
    %v689 = vld [vmem:[#allocation3 + $0x94] sm:$0xf]
    %v690 = vld [vmem:[#allocation3 + $0x98] sm:$0xf]
    %v691 = vld [vmem:[#allocation3 + $0x9c] sm:$0xf]
    %v692 = vld [vmem:[#allocation3 + $0xa0] sm:$0xf]
    %v693 = vld [vmem:[#allocation3 + $0xa4] sm:$0xf]
    %v694 = vld [vmem:[#allocation3 + $0xa8] sm:$0xf]
    %v695 = vld [vmem:[#allocation3 + $0xac] sm:$0xf]
    %v696 = vld [vmem:[#allocation3 + $0xb0] sm:$0xf]
    %v697 = vld [vmem:[#allocation3 + $0xb4] sm:$0xf]
    %v698 = vld [vmem:[#allocation3 + $0xb8] sm:$0xf]
    %v699 = vld [vmem:[#allocation3 + $0xbc] sm:$0xf]
    %v700 = vld [vmem:[#allocation3 + $0xc0] sm:$0xf]
    %v701 = vld [vmem:[#allocation3 + $0xc4] sm:$0xf]
    %v702 = vld [vmem:[#allocation3 + $0xc8] sm:$0xf]
    %v703 = vld [vmem:[#allocation3 + $0xcc] sm:$0xf]
    %v704 = vld [vmem:[#allocation3 + $0xd0] sm:$0xf]
    %v705 = vld [vmem:[#allocation3 + $0xd4] sm:$0xf]
    %v706 = vld [vmem:[#allocation3 + $0xd8] sm:$0xf]
    %v707 = vld [vmem:[#allocation3 + $0xdc] sm:$0xf]
    %v708 = vld [vmem:[#allocation3 + $0xe0] sm:$0xf]
    %v709 = vld [vmem:[#allocation3 + $0xe4] sm:$0xf]
    %v710 = vld [vmem:[#allocation3 + $0xe8] sm:$0xf]
    %v711 = vld [vmem:[#allocation3 + $0xec] sm:$0xf]
    %v712 = vld [vmem:[#allocation3 + $0xf0] sm:$0xf]
    %v713 = vld [vmem:[#allocation3 + $0xf4] sm:$0xf]
    %v714 = vld [vmem:[#allocation3 + $0xf8] sm:$0xf]
    %v715 = vld [vmem:[#allocation3 + $0xfc] sm:$0xf]
    %v780 = vunpack.c.l.b16 %v652
    %v781 = vunpack.c.l.b16 %v653
    %v782 = vunpack.c.l.b16 %v654
    %v783 = vunpack.c.l.b16 %v655
    %v784 = vunpack.c.l.b16 %v656
    %v785 = vunpack.c.l.b16 %v657
    %v786 = vunpack.c.l.b16 %v658
    %v787 = vunpack.c.l.b16 %v659
    %v788 = vunpack.c.l.b16 %v660
    %v789 = vunpack.c.l.b16 %v661
    %v790 = vunpack.c.l.b16 %v662
    %v791 = vunpack.c.l.b16 %v663
    %v792 = vunpack.c.l.b16 %v664
    %v793 = vunpack.c.l.b16 %v665
    %v794 = vunpack.c.l.b16 %v666
    %v795 = vunpack.c.l.b16 %v667
    %v796 = vunpack.c.l.b16 %v668
    %v797 = vunpack.c.l.b16 %v669
    %v798 = vunpack.c.l.b16 %v670
    %v799 = vunpack.c.l.b16 %v671
    %v800 = vunpack.c.l.b16 %v672
    %v801 = vunpack.c.l.b16 %v673
    %v802 = vunpack.c.l.b16 %v674
    %v803 = vunpack.c.l.b16 %v675
    %v804 = vunpack.c.l.b16 %v676
    %v805 = vunpack.c.l.b16 %v677
    %v806 = vunpack.c.l.b16 %v678
    %v807 = vunpack.c.l.b16 %v679
    %v808 = vunpack.c.l.b16 %v680
    %v809 = vunpack.c.l.b16 %v681
    %v810 = vunpack.c.l.b16 %v682
    %v811 = vunpack.c.l.b16 %v683
    %v812 = vunpack.c.l.b16 %v684
    %v813 = vunpack.c.l.b16 %v685
    %v814 = vunpack.c.l.b16 %v686
    %v815 = vunpack.c.l.b16 %v687
    %v816 = vunpack.c.l.b16 %v688
    %v817 = vunpack.c.l.b16 %v689
    %v818 = vunpack.c.l.b16 %v690
    %v819 = vunpack.c.l.b16 %v691
    %v820 = vunpack.c.l.b16 %v692
    %v821 = vunpack.c.l.b16 %v693
    %v822 = vunpack.c.l.b16 %v694
    %v823 = vunpack.c.l.b16 %v695
    %v824 = vunpack.c.l.b16 %v696
    %v825 = vunpack.c.l.b16 %v697
    %v826 = vunpack.c.l.b16 %v698
    %v827 = vunpack.c.l.b16 %v699
    %v828 = vunpack.c.l.b16 %v700
    %v829 = vunpack.c.l.b16 %v701
    %v830 = vunpack.c.l.b16 %v702
    %v831 = vunpack.c.l.b16 %v703
    %v832 = vunpack.c.l.b16 %v704
    %v833 = vunpack.c.l.b16 %v705
    %v834 = vunpack.c.l.b16 %v706
    %v835 = vunpack.c.l.b16 %v707
    %v836 = vunpack.c.l.b16 %v708
    %v837 = vunpack.c.l.b16 %v709
    %v838 = vunpack.c.l.b16 %v710
    %v839 = vunpack.c.l.b16 %v711
    %v840 = vunpack.c.l.b16 %v712
    %v841 = vunpack.c.l.b16 %v713
    %v842 = vunpack.c.l.b16 %v714
    %v843 = vunpack.c.l.b16 %v715
    %v844 = vpack.c.b16 %v781, %v780
    %v845 = vpack.c.b16 %v783, %v782
    %v846 = vpack.c.b16 %v785, %v784
    %v847 = vpack.c.b16 %v787, %v786
    %v848 = vpack.c.b16 %v789, %v788
    %v849 = vpack.c.b16 %v791, %v790
    %v850 = vpack.c.b16 %v793, %v792
    %v851 = vpack.c.b16 %v795, %v794
    %v852 = vpack.c.b16 %v797, %v796
    %v853 = vpack.c.b16 %v799, %v798
    %v854 = vpack.c.b16 %v801, %v800
    %v855 = vpack.c.b16 %v803, %v802
    %v856 = vpack.c.b16 %v805, %v804
    %v857 = vpack.c.b16 %v807, %v806
    %v858 = vpack.c.b16 %v809, %v808
    %v859 = vpack.c.b16 %v811, %v810
    %v860 = vpack.c.b16 %v813, %v812
    %v861 = vpack.c.b16 %v815, %v814
    %v862 = vpack.c.b16 %v817, %v816
    %v863 = vpack.c.b16 %v819, %v818
    %v864 = vpack.c.b16 %v821, %v820
    %v865 = vpack.c.b16 %v823, %v822
    %v866 = vpack.c.b16 %v825, %v824
    %v867 = vpack.c.b16 %v827, %v826
    %v868 = vpack.c.b16 %v829, %v828
    %v869 = vpack.c.b16 %v831, %v830
    %v870 = vpack.c.b16 %v833, %v832
    %v871 = vpack.c.b16 %v835, %v834
    %v872 = vpack.c.b16 %v837, %v836
    %v873 = vpack.c.b16 %v839, %v838
    %v874 = vpack.c.b16 %v841, %v840
    %v875 = vpack.c.b16 %v843, %v842
    %908 = vmatprep.subr.bf16.mxu0 0
    %909 = vmatpush1.bf16.msra.mxu0 %v851
    %910 = vmatprep.subr.bf16.mxu0 0
    %911 = vmatpush1.bf16.msra.mxu0 %v850
    %912 = vmatprep.subr.bf16.mxu0 0
    %913 = vmatpush1.bf16.msra.mxu0 %v849
    %914 = vmatprep.subr.bf16.mxu0 0
    %915 = vmatpush1.bf16.msra.mxu0 %v848
    %916 = vmatprep.subr.bf16.mxu0 0
    %917 = vmatpush1.bf16.msra.mxu0 %v847
    %918 = vmatprep.subr.bf16.mxu0 0
    %919 = vmatpush1.bf16.msra.mxu0 %v846
    %920 = vmatprep.subr.bf16.mxu0 0
    %921 = vmatpush1.bf16.msra.mxu0 %v845
    %922 = vmatprep.subr.bf16.mxu0 0
    %923 = vmatpush1.bf16.msra.mxu0 %v844
    %924 = vmatprep.subr.bf16.mxu0 0
    %925 = vmatpush2.bf16.msra.mxu0 %v859
    %926 = vmatprep.subr.bf16.mxu0 0
    %927 = vmatpush2.bf16.msra.mxu0 %v858
    %928 = vmatprep.subr.bf16.mxu0 0
    %929 = vmatpush2.bf16.msra.mxu0 %v857
    %930 = vmatprep.subr.bf16.mxu0 0
    %931 = vmatpush2.bf16.msra.mxu0 %v856
    %932 = vmatprep.subr.bf16.mxu0 0
    %933 = vmatpush2.bf16.msra.mxu0 %v855
    %934 = vmatprep.subr.bf16.mxu0 0
    %935 = vmatpush2.bf16.msra.mxu0 %v854
    %936 = vmatprep.subr.bf16.mxu0 0
    %937 = vmatpush2.bf16.msra.mxu0 %v853
    %938 = vmatprep.subr.bf16.mxu0 0
    %939 = vmatpush2.bf16.msra.mxu0 %v852
    %940 = vmatprep.mubr.bf16.mxu0 %v133
    %941 = vmatmul.mubr.bf16.gmra.mxu0 %v132
    %v942 = vpop.f32.mrf.mxu0
    %v943 = vadd.f32 %v239, %v942
    %v944 = vpop.f32.mrf.mxu0
    %v945 = vpop.f32.mrf.mxu0
    %v946 = vadd.f32 %v239, %v945
    %v947 = vpop.f32.mrf.mxu0
    %948 = vdwg.mxu0
    %949 = vmatprep.subr.bf16.mxu0 0
    %950 = vmatpush1.bf16.msra.mxu0 %v867
    %951 = vmatprep.subr.bf16.mxu0 0
    %952 = vmatpush1.bf16.msra.mxu0 %v866
    %953 = vmatprep.subr.bf16.mxu0 0
    %954 = vmatpush1.bf16.msra.mxu0 %v865
    %955 = vmatprep.subr.bf16.mxu0 0
    %956 = vmatpush1.bf16.msra.mxu0 %v864
    %957 = vmatprep.subr.bf16.mxu0 0
    %958 = vmatpush1.bf16.msra.mxu0 %v863
    %959 = vmatprep.subr.bf16.mxu0 0
    %960 = vmatpush1.bf16.msra.mxu0 %v862
    %961 = vmatprep.subr.bf16.mxu0 0
    %962 = vmatpush1.bf16.msra.mxu0 %v861
    %963 = vmatprep.subr.bf16.mxu0 0
    %964 = vmatpush1.bf16.msra.mxu0 %v860
    %965 = vmatprep.subr.bf16.mxu0 0
    %966 = vmatpush2.bf16.msra.mxu0 %v875
    %967 = vmatprep.subr.bf16.mxu0 0
    %968 = vmatpush2.bf16.msra.mxu0 %v874
    %969 = vmatprep.subr.bf16.mxu0 0
    %970 = vmatpush2.bf16.msra.mxu0 %v873
    %971 = vmatprep.subr.bf16.mxu0 0
    %972 = vmatpush2.bf16.msra.mxu0 %v872
    %973 = vmatprep.subr.bf16.mxu0 0
    %974 = vmatpush2.bf16.msra.mxu0 %v871
    %975 = vmatprep.subr.bf16.mxu0 0
    %976 = vmatpush2.bf16.msra.mxu0 %v870
    %977 = vmatprep.subr.bf16.mxu0 0
    %978 = vmatpush2.bf16.msra.mxu0 %v869
    %979 = vmatprep.subr.bf16.mxu0 0
    %980 = vmatpush2.bf16.msra.mxu0 %v868
    %981 = vmatprep.mubr.bf16.mxu0 %v135
    %982 = vmatmul.mubr.bf16.gmra.mxu0 %v134
    %v983 = vpop.f32.mrf.mxu0
    %v984 = vadd.f32 %v943, %v983
    %v985 = vpop.f32.mrf.mxu0
    %v986 = vpop.f32.mrf.mxu0
    %v987 = vadd.f32 %v946, %v986
    %v988 = vpop.f32.mrf.mxu0
    %989 = vdwg.mxu0
    %v990 = vadd.f32 %v646, %v649
    %v991 = vrot.slane %v990, 4
    %v992 = vadd.f32 %v990, %v991
    %v993 = vrot.slane %v992, 2
    %v994 = vadd.f32 %v992, %v993
    %v995 = vrot.slane %v994, 1
    %v996 = vadd.f32 %v994, %v995
    %v997 = vadd.f32 %v984, %v987
    %v998 = vrot.slane %v997, 4
    %v999 = vadd.f32 %v997, %v998
    %v1000 = vrot.slane %v999, 2
    %v1001 = vadd.f32 %v999, %v1000
    %v1002 = vrot.slane %v1001, 1
    %v1003 = vadd.f32 %v1001, %v1002
    %v1004 = vadd.f32 %v996, %v1003
    %v1005 = vmul.f32 %v1004, 0.03125
    %v1006 = vsub.f32 %v646, %v1005
    %v1007 = vsub.f32 %v649, %v1005
    %v1008 = vmul.f32 %v1006, %v1006
    %v1009 = vmul.f32 %v1007, %v1007
    %v1010 = vadd.f32 %v1008, %v1009
    %v1011 = vrot.slane %v1010, 4
    %v1012 = vadd.f32 %v1010, %v1011
    %v1013 = vrot.slane %v1012, 2
    %v1014 = vadd.f32 %v1012, %v1013
    %v1015 = vrot.slane %v1014, 1
    %v1016 = vadd.f32 %v1014, %v1015
    %v1017 = vsub.f32 %v984, %v1005
    %v1018 = vsub.f32 %v987, %v1005
    %v1019 = vmul.f32 %v1017, %v1017
    %v1020 = vmul.f32 %v1018, %v1018
    %v1021 = vadd.f32 %v1019, %v1020
    %v1022 = vrot.slane %v1021, 4
    %v1023 = vadd.f32 %v1021, %v1022
    %v1024 = vrot.slane %v1023, 2
    %v1025 = vadd.f32 %v1023, %v1024
    %v1026 = vrot.slane %v1025, 1
    %v1027 = vadd.f32 %v1025, %v1026
    %v1028 = vadd.f32 %v1016, %v1027
    %v1029 = vmul.f32 %v1028, 0.03125
    %v1030 = vadd.f32 %v1029, 1e-05
    %v1031 = vrsqrt.pop %v1030
    %v1032 = vld [vmem:[%s4] sm:$0x1]
    %v1033 = vmul.f32 %v1031, %v1032
    %v1034 = vld [vmem:[%s5] sm:$0x1]
    %v1035 = vmul.f32 %v1005, %v1033
    %v1036 = vsub.f32 %v1034, %v1035
    %v1037 = vlaneseq
    %v1038 = vshrl.u32 %v1037, 7
    %v1039 = vsub.s32 0, %v1038
    %v1040 = vrot.slane %v1033, %v1039
    %v1041 = vmul.f32 %v646, %v1040
    %v1042 = vmul.f32 %v649, %v1040
    %v1044 = vlaneseq
    %v1045 = vshrl.u32 %v1044, 7
    %v1046 = vsub.s32 0, %v1045
    %v1047 = vrot.slane %v1036, %v1046
    %v1049 = vadd.f32 %v1041, %v1047
    %v1050 = vadd.f32 %v1042, %v1047
    %v1051 = vmax.f32 %v1049, 0.0
    %v1052 = vmax.f32 %v1050, 0.0
    %v1053 = vmul.f32 %v984, %v1040
    %v1054 = vmul.f32 %v987, %v1040
    %v1055 = vadd.f32 %v1053, %v1047
    %v1056 = vadd.f32 %v1054, %v1047
    %v1057 = vmax.f32 %v1055, 0.0
    %v1058 = vmax.f32 %v1056, 0.0
    %v1059 = vrot.slane %v1051, 1
    %v1060 = vrot.slane %v1052, 1
    %v1061 = vsel %vm102, %v1059, %v1060
    %v1062 = vsel %vm102, %v1060, %v1059
    %v1063 = vsel %vm109, %v1061, 0.0
    %v1064 = vsel %vm110, %v1062, 0.0
    %v1065 = vrot.slane %v1057, 7
    %v1066 = vrot.slane %v1058, 7
    %v1067 = vsel %vm119, %v1065, %v1066
    %v1068 = vsel %vm119, %v1066, %v1065
    %v1069 = vsel %vm126, %v1068, 0.0
    %v1070 = vsel %vm127, %v1067, 0.0
    %v1071 = vpack.c.bf16 %v1058, %v1057
    %v1072 = vpack.c.bf16 %v1052, %v1051
    %v1073 = vpack.c.bf16 %v1070, %v1069
    %v1074 = vpack.c.bf16 %v1064, %v1063
    %v1075 = vld [vmem:[%s8] sm:$0x1]
    %v1076 = vld [vmem:[%s6] sm:$0xf]
    %v1077 = vld [vmem:[%s6 + $0x4] sm:$0xf]
    %v1078 = vld [vmem:[%s6 + $0x8] sm:$0xf]
    %v1079 = vld [vmem:[%s6 + $0xc] sm:$0xf]
    %v1080 = vld [vmem:[%s6 + $0x10] sm:$0xf]
    %v1081 = vld [vmem:[%s6 + $0x14] sm:$0xf]
    %v1082 = vld [vmem:[%s6 + $0x18] sm:$0xf]
    %v1083 = vld [vmem:[%s6 + $0x1c] sm:$0xf]
    %v1084 = vld [vmem:[%s6 + $0x20] sm:$0xf]
    %v1085 = vld [vmem:[%s6 + $0x24] sm:$0xf]
    %v1086 = vld [vmem:[%s6 + $0x28] sm:$0xf]
    %v1087 = vld [vmem:[%s6 + $0x2c] sm:$0xf]
    %v1088 = vld [vmem:[%s6 + $0x30] sm:$0xf]
    %v1089 = vld [vmem:[%s6 + $0x34] sm:$0xf]
    %v1090 = vld [vmem:[%s6 + $0x38] sm:$0xf]
    %v1091 = vld [vmem:[%s6 + $0x3c] sm:$0xf]
    %v1092 = vld [vmem:[%s6 + $0x40] sm:$0xf]
    %v1093 = vld [vmem:[%s6 + $0x44] sm:$0xf]
    %v1094 = vld [vmem:[%s6 + $0x48] sm:$0xf]
    %v1095 = vld [vmem:[%s6 + $0x4c] sm:$0xf]
    %v1096 = vld [vmem:[%s6 + $0x50] sm:$0xf]
    %v1097 = vld [vmem:[%s6 + $0x54] sm:$0xf]
    %v1098 = vld [vmem:[%s6 + $0x58] sm:$0xf]
    %v1099 = vld [vmem:[%s6 + $0x5c] sm:$0xf]
    %v1100 = vld [vmem:[%s6 + $0x60] sm:$0xf]
    %v1101 = vld [vmem:[%s6 + $0x64] sm:$0xf]
    %v1102 = vld [vmem:[%s6 + $0x68] sm:$0xf]
    %v1103 = vld [vmem:[%s6 + $0x6c] sm:$0xf]
    %v1104 = vld [vmem:[%s6 + $0x70] sm:$0xf]
    %v1105 = vld [vmem:[%s6 + $0x74] sm:$0xf]
    %v1106 = vld [vmem:[%s6 + $0x78] sm:$0xf]
    %v1107 = vld [vmem:[%s6 + $0x7c] sm:$0xf]
    %v1108 = vld [vmem:[%s6 + $0x80] sm:$0xf]
    %v1109 = vld [vmem:[%s6 + $0x84] sm:$0xf]
    %v1110 = vld [vmem:[%s6 + $0x88] sm:$0xf]
    %v1111 = vld [vmem:[%s6 + $0x8c] sm:$0xf]
    %v1112 = vld [vmem:[%s6 + $0x90] sm:$0xf]
    %v1113 = vld [vmem:[%s6 + $0x94] sm:$0xf]
    %v1114 = vld [vmem:[%s6 + $0x98] sm:$0xf]
    %v1115 = vld [vmem:[%s6 + $0x9c] sm:$0xf]
    %v1116 = vld [vmem:[%s6 + $0xa0] sm:$0xf]
    %v1117 = vld [vmem:[%s6 + $0xa4] sm:$0xf]
    %v1118 = vld [vmem:[%s6 + $0xa8] sm:$0xf]
    %v1119 = vld [vmem:[%s6 + $0xac] sm:$0xf]
    %v1120 = vld [vmem:[%s6 + $0xb0] sm:$0xf]
    %v1121 = vld [vmem:[%s6 + $0xb4] sm:$0xf]
    %v1122 = vld [vmem:[%s6 + $0xb8] sm:$0xf]
    %v1123 = vld [vmem:[%s6 + $0xbc] sm:$0xf]
    %v1125 = vlaneseq
    %v1126 = vshrl.u32 %v1125, 7
    %v1127 = vsub.s32 0, %v1126
    %v1128 = vrot.slane %v1075, %v1127
    %v1178 = vunpack.c.l.b16 %v1076
    %v1179 = vunpack.c.l.b16 %v1077
    %v1180 = vunpack.c.l.b16 %v1078
    %v1181 = vunpack.c.l.b16 %v1079
    %v1182 = vunpack.c.l.b16 %v1080
    %v1183 = vunpack.c.l.b16 %v1081
    %v1184 = vunpack.c.l.b16 %v1082
    %v1185 = vunpack.c.l.b16 %v1083
    %v1186 = vunpack.c.l.b16 %v1084
    %v1187 = vunpack.c.l.b16 %v1085
    %v1188 = vunpack.c.l.b16 %v1086
    %v1189 = vunpack.c.l.b16 %v1087
    %v1190 = vunpack.c.l.b16 %v1088
    %v1191 = vunpack.c.l.b16 %v1089
    %v1192 = vunpack.c.l.b16 %v1090
    %v1193 = vunpack.c.l.b16 %v1091
    %v1194 = vunpack.c.l.b16 %v1092
    %v1195 = vunpack.c.l.b16 %v1093
    %v1196 = vunpack.c.l.b16 %v1094
    %v1197 = vunpack.c.l.b16 %v1095
    %v1198 = vunpack.c.l.b16 %v1096
    %v1199 = vunpack.c.l.b16 %v1097
    %v1200 = vunpack.c.l.b16 %v1098
    %v1201 = vunpack.c.l.b16 %v1099
    %v1202 = vunpack.c.l.b16 %v1100
    %v1203 = vunpack.c.l.b16 %v1101
    %v1204 = vunpack.c.l.b16 %v1102
    %v1205 = vunpack.c.l.b16 %v1103
    %v1206 = vunpack.c.l.b16 %v1104
    %v1207 = vunpack.c.l.b16 %v1105
    %v1208 = vunpack.c.l.b16 %v1106
    %v1209 = vunpack.c.l.b16 %v1107
    %v1210 = vunpack.c.l.b16 %v1108
    %v1211 = vunpack.c.l.b16 %v1109
    %v1212 = vunpack.c.l.b16 %v1110
    %v1213 = vunpack.c.l.b16 %v1111
    %v1214 = vunpack.c.l.b16 %v1112
    %v1215 = vunpack.c.l.b16 %v1113
    %v1216 = vunpack.c.l.b16 %v1114
    %v1217 = vunpack.c.l.b16 %v1115
    %v1218 = vunpack.c.l.b16 %v1116
    %v1219 = vunpack.c.l.b16 %v1117
    %v1220 = vunpack.c.l.b16 %v1118
    %v1221 = vunpack.c.l.b16 %v1119
    %v1222 = vunpack.c.l.b16 %v1120
    %v1223 = vunpack.c.l.b16 %v1121
    %v1224 = vunpack.c.l.b16 %v1122
    %v1225 = vunpack.c.l.b16 %v1123
    %v1226 = vpack.c.b16 %v1179, %v1178
    %v1227 = vpack.c.b16 %v1181, %v1180
    %v1228 = vpack.c.b16 %v1183, %v1182
    %v1229 = vpack.c.b16 %v1185, %v1184
    %v1230 = vpack.c.b16 %v1187, %v1186
    %v1231 = vpack.c.b16 %v1189, %v1188
    %v1232 = vpack.c.b16 %v1191, %v1190
    %v1233 = vpack.c.b16 %v1193, %v1192
    %v1234 = vpack.c.b16 %v1195, %v1194
    %v1235 = vpack.c.b16 %v1197, %v1196
    %v1236 = vpack.c.b16 %v1199, %v1198
    %v1237 = vpack.c.b16 %v1201, %v1200
    %v1238 = vpack.c.b16 %v1203, %v1202
    %v1239 = vpack.c.b16 %v1205, %v1204
    %v1240 = vpack.c.b16 %v1207, %v1206
    %v1241 = vpack.c.b16 %v1209, %v1208
    %v1242 = vpack.c.b16 %v1211, %v1210
    %v1243 = vpack.c.b16 %v1213, %v1212
    %v1244 = vpack.c.b16 %v1215, %v1214
    %v1245 = vpack.c.b16 %v1217, %v1216
    %v1246 = vpack.c.b16 %v1219, %v1218
    %v1247 = vpack.c.b16 %v1221, %v1220
    %v1248 = vpack.c.b16 %v1223, %v1222
    %v1249 = vpack.c.b16 %v1225, %v1224
    %1274 = vmatprep.subr.bf16.mxu0 0
    %1275 = vmatpush1.bf16.msra.mxu0 %v1233
    %1276 = vmatprep.subr.bf16.mxu0 0
    %1277 = vmatpush1.bf16.msra.mxu0 %v1232
    %1278 = vmatprep.subr.bf16.mxu0 0
    %1279 = vmatpush1.bf16.msra.mxu0 %v1231
    %1280 = vmatprep.subr.bf16.mxu0 0
    %1281 = vmatpush1.bf16.msra.mxu0 %v1230
    %1282 = vmatprep.subr.bf16.mxu0 0
    %1283 = vmatpush1.bf16.msra.mxu0 %v1229
    %1284 = vmatprep.subr.bf16.mxu0 0
    %1285 = vmatpush1.bf16.msra.mxu0 %v1228
    %1286 = vmatprep.subr.bf16.mxu0 0
    %1287 = vmatpush1.bf16.msra.mxu0 %v1227
    %1288 = vmatprep.subr.bf16.mxu0 0
    %1289 = vmatpush1.bf16.msra.mxu0 %v1226
    %1290 = vmatprep.subr.bf16.mxu0 0
    %1291 = vmatpush2.bf16.msra.mxu0 %v1241
    %1292 = vmatprep.subr.bf16.mxu0 0
    %1293 = vmatpush2.bf16.msra.mxu0 %v1240
    %1294 = vmatprep.subr.bf16.mxu0 0
    %1295 = vmatpush2.bf16.msra.mxu0 %v1239
    %1296 = vmatprep.subr.bf16.mxu0 0
    %1297 = vmatpush2.bf16.msra.mxu0 %v1238
    %1298 = vmatprep.subr.bf16.mxu0 0
    %1299 = vmatpush2.bf16.msra.mxu0 %v1237
    %1300 = vmatprep.subr.bf16.mxu0 0
    %1301 = vmatpush2.bf16.msra.mxu0 %v1236
    %1302 = vmatprep.subr.bf16.mxu0 0
    %1303 = vmatpush2.bf16.msra.mxu0 %v1235
    %1304 = vmatprep.subr.bf16.mxu0 0
    %1305 = vmatpush2.bf16.msra.mxu0 %v1234
    %1306 = vmatprep.mubr.bf16.mxu0 %v1072
    %1307 = vmatmul.mubr.bf16.gmra.mxu0 %v1071
    %v1308 = vpop.f32.mrf.mxu0
    %v1309 = vadd.f32 %v1128, %v1308
    %v1310 = vpop.f32.mrf.mxu0
    %v1311 = vpop.f32.mrf.mxu0
    %v1312 = vadd.f32 %v1128, %v1311
    %v1313 = vpop.f32.mrf.mxu0
    %1314 = vmatprep.mubr.bf16.mxu0 %v1071
    %1315 = vmatmul.mubr.bf16.gmra.mxu0 %v1074
    %v1316 = vpop.f32.mrf.mxu0
    %v1317 = vadd.f32 %v1128, %v1316
    %v1318 = vpop.f32.mrf.mxu0
    %v1319 = vpop.f32.mrf.mxu0
    %v1320 = vadd.f32 %v1128, %v1319
    %v1321 = vpop.f32.mrf.mxu0
    %1322 = vdwg.mxu0
    %1323 = vmatprep.subr.bf16.mxu0 0
    %1324 = vmatpush1.bf16.msra.mxu0 %v1249
    %1325 = vmatprep.subr.bf16.mxu0 0
    %1326 = vmatpush1.bf16.msra.mxu0 %v1248
    %1327 = vmatprep.subr.bf16.mxu0 0
    %1328 = vmatpush1.bf16.msra.mxu0 %v1247
    %1329 = vmatprep.subr.bf16.mxu0 0
    %1330 = vmatpush1.bf16.msra.mxu0 %v1246
    %1331 = vmatprep.subr.bf16.mxu0 0
    %1332 = vmatpush1.bf16.msra.mxu0 %v1245
    %1333 = vmatprep.subr.bf16.mxu0 0
    %1334 = vmatpush1.bf16.msra.mxu0 %v1244
    %1335 = vmatprep.subr.bf16.mxu0 0
    %1336 = vmatpush1.bf16.msra.mxu0 %v1243
    %1337 = vmatprep.subr.bf16.mxu0 0
    %1338 = vmatpush1.bf16.msra.mxu0 %v1242
    %1339 = vmatprep.subr.bf16.mxu0 0
    %1340 = vmatpush2.bf16.msra.mxu0 0
    %1341 = vmatprep.subr.bf16.mxu0 0
    %1342 = vmatpush2.bf16.msra.mxu0 0
    %1343 = vmatprep.subr.bf16.mxu0 0
    %1344 = vmatpush2.bf16.msra.mxu0 0
    %1345 = vmatprep.subr.bf16.mxu0 0
    %1346 = vmatpush2.bf16.msra.mxu0 0
    %1347 = vmatprep.subr.bf16.mxu0 0
    %1348 = vmatpush2.bf16.msra.mxu0 0
    %1349 = vmatprep.subr.bf16.mxu0 0
    %1350 = vmatpush2.bf16.msra.mxu0 0
    %1351 = vmatprep.subr.bf16.mxu0 0
    %1352 = vmatpush2.bf16.msra.mxu0 0
    %1353 = vmatprep.subr.bf16.mxu0 0
    %1354 = vmatpush2.bf16.msra.mxu0 0
    %1355 = vmatprep.mubr.bf16.mxu0 0
    %1356 = vmatmul.mubr.bf16.gmra.mxu0 %v1073
    %v1357 = vpop.f32.mrf.mxu0
    %v1358 = vadd.f32 %v1309, %v1357
    %v1359 = vpop.f32.mrf.mxu0
    %v1360 = vpop.f32.mrf.mxu0
    %v1361 = vadd.f32 %v1312, %v1360
    %v1362 = vpop.f32.mrf.mxu0
    %1363 = vmatprep.mubr.bf16.mxu0 0
    %1364 = vmatmul.mubr.bf16.gmra.mxu0 %v1072
    %v1365 = vpop.f32.mrf.mxu0
    %v1366 = vadd.f32 %v1317, %v1365
    %v1367 = vpop.f32.mrf.mxu0
    %v1368 = vpop.f32.mrf.mxu0
    %v1369 = vadd.f32 %v1320, %v1368
    %v1370 = vpop.f32.mrf.mxu0
    %1371 = vdwg.mxu0
    %v1372 = vld [vmem:[%s7] sm:$0xf]
    %v1373 = vld [vmem:[%s7 + $0x4] sm:$0xf]
    %v1374 = vld [vmem:[%s7 + $0x8] sm:$0xf]
    %v1375 = vld [vmem:[%s7 + $0xc] sm:$0xf]
    %v1376 = vld [vmem:[%s7 + $0x10] sm:$0xf]
    %v1377 = vld [vmem:[%s7 + $0x14] sm:$0xf]
    %v1378 = vld [vmem:[%s7 + $0x18] sm:$0xf]
    %v1379 = vld [vmem:[%s7 + $0x1c] sm:$0xf]
    %v1380 = vld [vmem:[%s7 + $0x20] sm:$0xf]
    %v1381 = vld [vmem:[%s7 + $0x24] sm:$0xf]
    %v1382 = vld [vmem:[%s7 + $0x28] sm:$0xf]
    %v1383 = vld [vmem:[%s7 + $0x2c] sm:$0xf]
    %v1384 = vld [vmem:[%s7 + $0x30] sm:$0xf]
    %v1385 = vld [vmem:[%s7 + $0x34] sm:$0xf]
    %v1386 = vld [vmem:[%s7 + $0x38] sm:$0xf]
    %v1387 = vld [vmem:[%s7 + $0x3c] sm:$0xf]
    %v1388 = vld [vmem:[%s7 + $0x40] sm:$0xf]
    %v1389 = vld [vmem:[%s7 + $0x44] sm:$0xf]
    %v1390 = vld [vmem:[%s7 + $0x48] sm:$0xf]
    %v1391 = vld [vmem:[%s7 + $0x4c] sm:$0xf]
    %v1392 = vld [vmem:[%s7 + $0x50] sm:$0xf]
    %v1393 = vld [vmem:[%s7 + $0x54] sm:$0xf]
    %v1394 = vld [vmem:[%s7 + $0x58] sm:$0xf]
    %v1395 = vld [vmem:[%s7 + $0x5c] sm:$0xf]
    %v1396 = vld [vmem:[%s7 + $0x60] sm:$0xf]
    %v1397 = vld [vmem:[%s7 + $0x64] sm:$0xf]
    %v1398 = vld [vmem:[%s7 + $0x68] sm:$0xf]
    %v1399 = vld [vmem:[%s7 + $0x6c] sm:$0xf]
    %v1400 = vld [vmem:[%s7 + $0x70] sm:$0xf]
    %v1401 = vld [vmem:[%s7 + $0x74] sm:$0xf]
    %v1402 = vld [vmem:[%s7 + $0x78] sm:$0xf]
    %v1403 = vld [vmem:[%s7 + $0x7c] sm:$0xf]
    %v1436 = vunpack.c.l.b16 %v1372
    %v1437 = vunpack.c.l.b16 %v1373
    %v1438 = vunpack.c.l.b16 %v1374
    %v1439 = vunpack.c.l.b16 %v1375
    %v1440 = vunpack.c.l.b16 %v1376
    %v1441 = vunpack.c.l.b16 %v1377
    %v1442 = vunpack.c.l.b16 %v1378
    %v1443 = vunpack.c.l.b16 %v1379
    %v1444 = vunpack.c.l.b16 %v1380
    %v1445 = vunpack.c.l.b16 %v1381
    %v1446 = vunpack.c.l.b16 %v1382
    %v1447 = vunpack.c.l.b16 %v1383
    %v1448 = vunpack.c.l.b16 %v1384
    %v1449 = vunpack.c.l.b16 %v1385
    %v1450 = vunpack.c.l.b16 %v1386
    %v1451 = vunpack.c.l.b16 %v1387
    %v1452 = vunpack.c.l.b16 %v1388
    %v1453 = vunpack.c.l.b16 %v1389
    %v1454 = vunpack.c.l.b16 %v1390
    %v1455 = vunpack.c.l.b16 %v1391
    %v1456 = vunpack.c.l.b16 %v1392
    %v1457 = vunpack.c.l.b16 %v1393
    %v1458 = vunpack.c.l.b16 %v1394
    %v1459 = vunpack.c.l.b16 %v1395
    %v1460 = vunpack.c.l.b16 %v1396
    %v1461 = vunpack.c.l.b16 %v1397
    %v1462 = vunpack.c.l.b16 %v1398
    %v1463 = vunpack.c.l.b16 %v1399
    %v1464 = vunpack.c.l.b16 %v1400
    %v1465 = vunpack.c.l.b16 %v1401
    %v1466 = vunpack.c.l.b16 %v1402
    %v1467 = vunpack.c.l.b16 %v1403
    %v1468 = vpack.c.b16 %v1437, %v1436
    %v1469 = vpack.c.b16 %v1439, %v1438
    %v1470 = vpack.c.b16 %v1441, %v1440
    %v1471 = vpack.c.b16 %v1443, %v1442
    %v1472 = vpack.c.b16 %v1445, %v1444
    %v1473 = vpack.c.b16 %v1447, %v1446
    %v1474 = vpack.c.b16 %v1449, %v1448
    %v1475 = vpack.c.b16 %v1451, %v1450
    %v1476 = vpack.c.b16 %v1453, %v1452
    %v1477 = vpack.c.b16 %v1455, %v1454
    %v1478 = vpack.c.b16 %v1457, %v1456
    %v1479 = vpack.c.b16 %v1459, %v1458
    %v1480 = vpack.c.b16 %v1461, %v1460
    %v1481 = vpack.c.b16 %v1463, %v1462
    %v1482 = vpack.c.b16 %v1465, %v1464
    %v1483 = vpack.c.b16 %v1467, %v1466
    %1500 = vmatprep.subr.bf16.mxu0 0
    %1501 = vmatpush1.bf16.msra.mxu0 %v1475
    %1502 = vmatprep.subr.bf16.mxu0 0
    %1503 = vmatpush1.bf16.msra.mxu0 %v1474
    %1504 = vmatprep.subr.bf16.mxu0 0
    %1505 = vmatpush1.bf16.msra.mxu0 %v1473
    %1506 = vmatprep.subr.bf16.mxu0 0
    %1507 = vmatpush1.bf16.msra.mxu0 %v1472
    %1508 = vmatprep.subr.bf16.mxu0 0
    %1509 = vmatpush1.bf16.msra.mxu0 %v1471
    %1510 = vmatprep.subr.bf16.mxu0 0
    %1511 = vmatpush1.bf16.msra.mxu0 %v1470
    %1512 = vmatprep.subr.bf16.mxu0 0
    %1513 = vmatpush1.bf16.msra.mxu0 %v1469
    %1514 = vmatprep.subr.bf16.mxu0 0
    %1515 = vmatpush1.bf16.msra.mxu0 %v1468
    %1516 = vmatprep.subr.bf16.mxu0 0
    %1517 = vmatpush2.bf16.msra.mxu0 %v1483
    %1518 = vmatprep.subr.bf16.mxu0 0
    %1519 = vmatpush2.bf16.msra.mxu0 %v1482
    %1520 = vmatprep.subr.bf16.mxu0 0
    %1521 = vmatpush2.bf16.msra.mxu0 %v1481
    %1522 = vmatprep.subr.bf16.mxu0 0
    %1523 = vmatpush2.bf16.msra.mxu0 %v1480
    %1524 = vmatprep.subr.bf16.mxu0 0
    %1525 = vmatpush2.bf16.msra.mxu0 %v1479
    %1526 = vmatprep.subr.bf16.mxu0 0
    %1527 = vmatpush2.bf16.msra.mxu0 %v1478
    %1528 = vmatprep.subr.bf16.mxu0 0
    %1529 = vmatpush2.bf16.msra.mxu0 %v1477
    %1530 = vmatprep.subr.bf16.mxu0 0
    %1531 = vmatpush2.bf16.msra.mxu0 %v1476
    %1532 = vmatprep.mubr.bf16.mxu0 %v1072
    %1533 = vmatmul.mubr.bf16.gmra.mxu0 %v1071
    %v1534 = vpop.f32.mrf.mxu0
    %v1535 = vadd.f32 %v1128, %v1534
    %v1536 = vpop.f32.mrf.mxu0
    %v1537 = vpop.f32.mrf.mxu0
    %v1538 = vadd.f32 %v1128, %v1537
    %v1539 = vpop.f32.mrf.mxu0
    %1540 = vmatprep.mubr.bf16.mxu0 %v1071
    %1541 = vmatmul.mubr.bf16.gmra.mxu0 %v1074
    %v1542 = vpop.f32.mrf.mxu0
    %v1543 = vadd.f32 %v1128, %v1542
    %v1544 = vpop.f32.mrf.mxu0
    %v1545 = vpop.f32.mrf.mxu0
    %v1546 = vadd.f32 %v1128, %v1545
    %v1547 = vpop.f32.mrf.mxu0
    %1548 = vdwg.mxu0
    %vm1549 = vcmask 523264
    %v1550 = vsel %vm1549, %v1358, 0.0
    %v1551 = vsel %vm1549, %v1361, 0.0
    %v1552 = vadd.f32 %v1550, %v1551
    %v1553 = vsel %vm1549, %v1366, 0.0
    %v1554 = vadd.f32 %v1552, %v1553
    %v1555 = vsel %vm1549, %v1369, 0.0
    %v1556 = vadd.f32 %v1554, %v1555
    %v1557 = vrot.slane %v1556, 4
    %v1558 = vadd.f32 %v1556, %v1557
    %v1559 = vrot.slane %v1558, 2
    %v1560 = vadd.f32 %v1558, %v1559
    %v1561 = vrot.slane %v1560, 1
    %v1562 = vadd.f32 %v1560, %v1561
    %v1563 = vsel %vm1549, %v1535, 0.0
    %v1564 = vsel %vm1549, %v1538, 0.0
    %v1565 = vadd.f32 %v1563, %v1564
    %v1566 = vsel %vm1549, %v1543, 0.0
    %v1567 = vadd.f32 %v1565, %v1566
    %v1568 = vsel %vm1549, %v1546, 0.0
    %v1569 = vadd.f32 %v1567, %v1568
    %v1570 = vrot.slane %v1569, 4
    %v1571 = vadd.f32 %v1569, %v1570
    %v1572 = vrot.slane %v1571, 2
    %v1573 = vadd.f32 %v1571, %v1572
    %v1574 = vrot.slane %v1573, 1
    %v1575 = vadd.f32 %v1573, %v1574
    %v1576 = vadd.f32 %v1562, %v1575
    %v1577 = vmul.f32 %v1576, 0.015625
    %v1578 = vsub.f32 %v1358, %v1577
    %v1579 = vsub.f32 %v1361, %v1577
    %v1580 = vsub.f32 %v1366, %v1577
    %v1581 = vsub.f32 %v1369, %v1577
    %v1582 = vmul.f32 %v1578, %v1578
    %v1583 = vmul.f32 %v1579, %v1579
    %v1584 = vmul.f32 %v1580, %v1580
    %v1585 = vmul.f32 %v1581, %v1581
    %v1586 = vsel %vm1549, %v1582, 0.0
    %v1587 = vsel %vm1549, %v1583, 0.0
    %v1588 = vadd.f32 %v1586, %v1587
    %v1589 = vsel %vm1549, %v1584, 0.0
    %v1590 = vadd.f32 %v1588, %v1589
    %v1591 = vsel %vm1549, %v1585, 0.0
    %v1592 = vadd.f32 %v1590, %v1591
    %v1593 = vrot.slane %v1592, 4
    %v1594 = vadd.f32 %v1592, %v1593
    %v1595 = vrot.slane %v1594, 2
    %v1596 = vadd.f32 %v1594, %v1595
    %v1597 = vrot.slane %v1596, 1
    %v1598 = vadd.f32 %v1596, %v1597
    %v1599 = vsub.f32 %v1535, %v1577
    %v1600 = vsub.f32 %v1538, %v1577
    %v1601 = vsub.f32 %v1543, %v1577
    %v1602 = vsub.f32 %v1546, %v1577
    %v1603 = vmul.f32 %v1599, %v1599
    %v1604 = vmul.f32 %v1600, %v1600
    %v1605 = vmul.f32 %v1601, %v1601
    %v1606 = vmul.f32 %v1602, %v1602
    %v1607 = vsel %vm1549, %v1603, 0.0
    %v1608 = vsel %vm1549, %v1604, 0.0
    %v1609 = vadd.f32 %v1607, %v1608
    %v1610 = vsel %vm1549, %v1605, 0.0
    %v1611 = vadd.f32 %v1609, %v1610
    %v1612 = vsel %vm1549, %v1606, 0.0
    %v1613 = vadd.f32 %v1611, %v1612
    %v1614 = vrot.slane %v1613, 4
    %v1615 = vadd.f32 %v1613, %v1614
    %v1616 = vrot.slane %v1615, 2
    %v1617 = vadd.f32 %v1615, %v1616
    %v1618 = vrot.slane %v1617, 1
    %v1619 = vadd.f32 %v1617, %v1618
    %v1620 = vadd.f32 %v1598, %v1619
    %v1621 = vmul.f32 %v1620, 0.015625
    %v1622 = vadd.f32 %v1621, 1e-05
    %v1623 = vrsqrt.pop %v1622
    %v1624 = vld [vmem:[%s9] sm:$0x1]
    %v1625 = vmul.f32 %v1623, %v1624
    %v1626 = vld [vmem:[%s10] sm:$0x1]
    %v1627 = vmul.f32 %v1577, %v1625
    %v1628 = vsub.f32 %v1626, %v1627
    %v1629 = vlaneseq
    %v1630 = vshrl.u32 %v1629, 7
    %v1631 = vsub.s32 0, %v1630
    %v1632 = vrot.slane %v1625, %v1631
    %v1633 = vmul.f32 %v1358, %v1632
    %v1634 = vmul.f32 %v1361, %v1632
    %v1635 = vmul.f32 %v1366, %v1632
    %v1636 = vmul.f32 %v1369, %v1632
    %v1638 = vlaneseq
    %v1639 = vshrl.u32 %v1638, 7
    %v1640 = vsub.s32 0, %v1639
    %v1641 = vrot.slane %v1628, %v1640
    %v1643 = vadd.f32 %v1633, %v1641
    %v1644 = vadd.f32 %v1634, %v1641
    %v1645 = vadd.f32 %v1635, %v1641
    %v1646 = vadd.f32 %v1636, %v1641
    %v1647 = vmax.f32 %v1643, 0.0
    %v1648 = vmax.f32 %v1644, 0.0
    %v1649 = vmax.f32 %v1645, 0.0
    %v1650 = vmax.f32 %v1646, 0.0
    %v1651 = vmul.f32 %v1535, %v1632
    %v1652 = vmul.f32 %v1538, %v1632
    %v1653 = vmul.f32 %v1543, %v1632
    %v1654 = vmul.f32 %v1546, %v1632
    %v1655 = vadd.f32 %v1651, %v1641
    %v1656 = vadd.f32 %v1652, %v1641
    %v1657 = vadd.f32 %v1653, %v1641
    %v1658 = vadd.f32 %v1654, %v1641
    %v1659 = vmax.f32 %v1655, 0.0
    %v1660 = vmax.f32 %v1656, 0.0
    %v1661 = vmax.f32 %v1657, 0.0
    %v1662 = vmax.f32 %v1658, 0.0
    %v1663 = vrot.slane %v1647, 1
    %v1664 = vrot.slane %v1648, 1
    %v1665 = vsel %vm102, %v1663, %v1664
    %v1666 = vsel %vm102, %v1664, %v1663
    %v1667 = vsel %vm109, %v1665, 0.0
    %v1668 = vsel %vm110, %v1666, 0.0
    %v1669 = vrot.slane %v1661, 7
    %v1670 = vrot.slane %v1662, 7
    %v1671 = vsel %vm119, %v1669, %v1670
    %v1672 = vsel %vm119, %v1670, %v1669
    %v1673 = vsel %vm126, %v1672, 0.0
    %v1674 = vsel %vm127, %v1671, 0.0
    %v1675 = vld [vmem:[%s11] sm:$0xf]
    %v1676 = vld [vmem:[%s11 + $0x4] sm:$0xf]
    %v1677 = vld [vmem:[%s11 + $0x8] sm:$0xf]
    %v1678 = vld [vmem:[%s11 + $0xc] sm:$0xf]
    %v1679 = vld [vmem:[%s11 + $0x10] sm:$0xf]
    %v1680 = vld [vmem:[%s11 + $0x14] sm:$0xf]
    %v1681 = vld [vmem:[%s11 + $0x18] sm:$0xf]
    %v1682 = vld [vmem:[%s11 + $0x1c] sm:$0xf]
    %v1683 = vld [vmem:[%s11 + $0x20] sm:$0xf]
    %v1684 = vld [vmem:[%s11 + $0x24] sm:$0xf]
    %v1685 = vld [vmem:[%s11 + $0x28] sm:$0xf]
    %v1686 = vld [vmem:[%s11 + $0x2c] sm:$0xf]
    %v1687 = vld [vmem:[%s11 + $0x30] sm:$0xf]
    %v1688 = vld [vmem:[%s11 + $0x34] sm:$0xf]
    %v1689 = vld [vmem:[%s11 + $0x38] sm:$0xf]
    %v1690 = vld [vmem:[%s11 + $0x3c] sm:$0xf]
    %v1691 = vld [vmem:[%s11 + $0x40] sm:$0xf]
    %v1692 = vld [vmem:[%s11 + $0x44] sm:$0xf]
    %v1693 = vld [vmem:[%s11 + $0x48] sm:$0xf]
    %v1694 = vld [vmem:[%s11 + $0x4c] sm:$0xf]
    %v1695 = vld [vmem:[%s11 + $0x50] sm:$0xf]
    %v1696 = vld [vmem:[%s11 + $0x54] sm:$0xf]
    %v1697 = vld [vmem:[%s11 + $0x58] sm:$0xf]
    %v1698 = vld [vmem:[%s11 + $0x5c] sm:$0xf]
    %v1699 = vpack.c.bf16 %v1660, %v1659
    %v1700 = vpack.c.bf16 %v1650, %v1649
    %v1701 = vpack.c.bf16 %v1662, %v1661
    %v1702 = vpack.c.bf16 %v1668, %v1667
    %v1703 = vpack.c.bf16 %v1648, %v1647
    %v1712 = vunpack.c.l.b16 %v1683
    %v1713 = vunpack.c.l.b16 %v1684
    %v1714 = vunpack.c.l.b16 %v1685
    %v1715 = vunpack.c.l.b16 %v1686
    %v1716 = vunpack.c.l.b16 %v1687
    %v1717 = vunpack.c.l.b16 %v1688
    %v1718 = vunpack.c.l.b16 %v1689
    %v1719 = vunpack.c.l.b16 %v1690
    %v1720 = vpack.c.b16 %v1713, %v1712
    %v1721 = vpack.c.b16 %v1715, %v1714
    %v1722 = vpack.c.b16 %v1717, %v1716
    %v1723 = vpack.c.b16 %v1719, %v1718
    %v1729 = vsel %vm1549, %v1703, 0
    %v1732 = vsel %vm1549, %v1699, 0
    %v1735 = vsel %vm1549, %v1700, 0
    %v1738 = vsel %vm1549, %v1701, 0
    %1740 = vmatprep.subr.bf16.mxu0 0
    %1741 = vmatpush1.bf16.msra.mxu0 0
    %1742 = vmatprep.subr.bf16.mxu0 0
    %1743 = vmatpush1.bf16.msra.mxu0 0
    %1744 = vmatprep.subr.bf16.mxu0 0
    %1745 = vmatpush1.bf16.msra.mxu0 0
    %1746 = vmatprep.subr.bf16.mxu0 0
    %1747 = vmatpush1.bf16.msra.mxu0 0
    %1748 = vmatprep.subr.bf16.mxu0 0
    %1749 = vmatpush1.bf16.msra.mxu0 %v1723
    %1750 = vmatprep.subr.bf16.mxu0 0
    %1751 = vmatpush1.bf16.msra.mxu0 %v1722
    %1752 = vmatprep.subr.bf16.mxu0 0
    %1753 = vmatpush1.bf16.msra.mxu0 %v1721
    %1754 = vmatprep.subr.bf16.mxu0 0
    %1755 = vmatpush1.bf16.msra.mxu0 %v1720
    %1756 = vmatprep.subr.bf16.mxu0 0
    %1757 = vmatpush2.bf16.msra.mxu0 0
    %1758 = vmatprep.subr.bf16.mxu0 0
    %1759 = vmatpush2.bf16.msra.mxu0 0
    %1760 = vmatprep.subr.bf16.mxu0 0
    %1761 = vmatpush2.bf16.msra.mxu0 0
    %1762 = vmatprep.subr.bf16.mxu0 0
    %1763 = vmatpush2.bf16.msra.mxu0 0
    %1764 = vmatprep.subr.bf16.mxu0 0
    %1765 = vmatpush2.bf16.msra.mxu0 0
    %1766 = vmatprep.subr.bf16.mxu0 0
    %1767 = vmatpush2.bf16.msra.mxu0 0
    %1768 = vmatprep.subr.bf16.mxu0 0
    %1769 = vmatpush2.bf16.msra.mxu0 0
    %1770 = vmatprep.subr.bf16.mxu0 0
    %1771 = vmatpush2.bf16.msra.mxu0 0
    %1772 = vmatprep.mubr.bf16.mxu0 0
    %1773 = vmatmul.mubr.bf16.gmra.mxu0 %v1729
    %v1774 = vpop.f32.mrf.mxu0
    %v1775 = vadd.f32 0.0, %v1774
    %v1776 = vpop.f32.mrf.mxu0
    %v1777 = vpop.f32.mrf.mxu0
    %v1778 = vadd.f32 0.0, %v1777
    %v1779 = vpop.f32.mrf.mxu0
    %1780 = vmatprep.mubr.bf16.mxu0 0
    %1781 = vmatmul.mubr.bf16.gmra.mxu0 %v1732
    %v1782 = vpop.f32.mrf.mxu0
    %v1783 = vadd.f32 0.0, %v1782
    %v1784 = vpop.f32.mrf.mxu0
    %v1785 = vpop.f32.mrf.mxu0
    %v1786 = vadd.f32 0.0, %v1785
    %v1787 = vpop.f32.mrf.mxu0
    %1788 = vmatprep.mubr.bf16.mxu0 0
    %1789 = vmatmul.mubr.bf16.gmra.mxu0 %v1735
    %v1790 = vpop.f32.mrf.mxu0
    %v1791 = vadd.f32 0.0, %v1790
    %v1792 = vpop.f32.mrf.mxu0
    %v1793 = vpop.f32.mrf.mxu0
    %v1794 = vadd.f32 0.0, %v1793
    %v1795 = vpop.f32.mrf.mxu0
    %1796 = vmatprep.mubr.bf16.mxu0 0
    %1797 = vmatmul.mubr.bf16.gmra.mxu0 %v1738
    %v1798 = vpop.f32.mrf.mxu0
    %v1799 = vadd.f32 0.0, %v1798
    %v1800 = vpop.f32.mrf.mxu0
    %v1801 = vpop.f32.mrf.mxu0
    %v1802 = vadd.f32 0.0, %v1801
    %v1803 = vpop.f32.mrf.mxu0
    %1804 = vdwg.mxu0
    %v1813 = vunpack.c.l.b16 %v1675
    %v1814 = vunpack.c.l.b16 %v1676
    %v1815 = vunpack.c.l.b16 %v1677
    %v1816 = vunpack.c.l.b16 %v1678
    %v1817 = vunpack.c.l.b16 %v1679
    %v1818 = vunpack.c.l.b16 %v1680
    %v1819 = vunpack.c.l.b16 %v1681
    %v1820 = vunpack.c.l.b16 %v1682
    %v1821 = vpack.c.b16 %v1814, %v1813
    %v1822 = vpack.c.b16 %v1816, %v1815
    %v1823 = vpack.c.b16 %v1818, %v1817
    %v1824 = vpack.c.b16 %v1820, %v1819
    %v1830 = vsel %vm1549, %v1702, 0
    %1832 = vmatprep.subr.bf16.mxu0 0
    %1833 = vmatpush1.bf16.msra.mxu0 0
    %1834 = vmatprep.subr.bf16.mxu0 0
    %1835 = vmatpush1.bf16.msra.mxu0 0
    %1836 = vmatprep.subr.bf16.mxu0 0
    %1837 = vmatpush1.bf16.msra.mxu0 0
    %1838 = vmatprep.subr.bf16.mxu0 0
    %1839 = vmatpush1.bf16.msra.mxu0 0
    %1840 = vmatprep.subr.bf16.mxu0 0
    %1841 = vmatpush1.bf16.msra.mxu0 %v1824
    %1842 = vmatprep.subr.bf16.mxu0 0
    %1843 = vmatpush1.bf16.msra.mxu0 %v1823
    %1844 = vmatprep.subr.bf16.mxu0 0
    %1845 = vmatpush1.bf16.msra.mxu0 %v1822
    %1846 = vmatprep.subr.bf16.mxu0 0
    %1847 = vmatpush1.bf16.msra.mxu0 %v1821
    %1848 = vmatprep.subr.bf16.mxu0 0
    %1849 = vmatpush2.bf16.msra.mxu0 0
    %1850 = vmatprep.subr.bf16.mxu0 0
    %1851 = vmatpush2.bf16.msra.mxu0 0
    %1852 = vmatprep.subr.bf16.mxu0 0
    %1853 = vmatpush2.bf16.msra.mxu0 0
    %1854 = vmatprep.subr.bf16.mxu0 0
    %1855 = vmatpush2.bf16.msra.mxu0 0
    %1856 = vmatprep.subr.bf16.mxu0 0
    %1857 = vmatpush2.bf16.msra.mxu0 0
    %1858 = vmatprep.subr.bf16.mxu0 0
    %1859 = vmatpush2.bf16.msra.mxu0 0
    %1860 = vmatprep.subr.bf16.mxu0 0
    %1861 = vmatpush2.bf16.msra.mxu0 0
    %1862 = vmatprep.subr.bf16.mxu0 0
    %1863 = vmatpush2.bf16.msra.mxu0 0
    %1864 = vmatprep.mubr.bf16.mxu0 0
    %1865 = vmatmul.mubr.bf16.gmra.mxu0 %v1732
    %v1866 = vpop.f32.mrf.mxu0
    %v1867 = vadd.f32 %v1775, %v1866
    %v1868 = vpop.f32.mrf.mxu0
    %v1869 = vpop.f32.mrf.mxu0
    %v1870 = vadd.f32 %v1778, %v1869
    %v1871 = vpop.f32.mrf.mxu0
    %1872 = vmatprep.mubr.bf16.mxu0 0
    %1873 = vmatmul.mubr.bf16.gmra.mxu0 %v1735
    %v1874 = vpop.f32.mrf.mxu0
    %v1875 = vadd.f32 %v1783, %v1874
    %v1876 = vpop.f32.mrf.mxu0
    %v1877 = vpop.f32.mrf.mxu0
    %v1878 = vadd.f32 %v1786, %v1877
    %v1879 = vpop.f32.mrf.mxu0
    %1880 = vmatprep.mubr.bf16.mxu0 0
    %1881 = vmatmul.mubr.bf16.gmra.mxu0 %v1738
    %v1882 = vpop.f32.mrf.mxu0
    %v1883 = vadd.f32 %v1791, %v1882
    %v1884 = vpop.f32.mrf.mxu0
    %v1885 = vpop.f32.mrf.mxu0
    %v1886 = vadd.f32 %v1794, %v1885
    %v1887 = vpop.f32.mrf.mxu0
    %1888 = vmatprep.mubr.bf16.mxu0 0
    %1889 = vmatmul.mubr.bf16.gmra.mxu0 %v1830
    %v1890 = vpop.f32.mrf.mxu0
    %v1891 = vadd.f32 %v1799, %v1890
    %v1892 = vpop.f32.mrf.mxu0
    %v1893 = vpop.f32.mrf.mxu0
    %v1894 = vadd.f32 %v1802, %v1893
    %v1895 = vpop.f32.mrf.mxu0
    %1896 = vdwg.mxu0
    %v1897 = vpack.c.bf16 %v1674, %v1673
    %v1906 = vunpack.c.l.b16 %v1691
    %v1907 = vunpack.c.l.b16 %v1692
    %v1908 = vunpack.c.l.b16 %v1693
    %v1909 = vunpack.c.l.b16 %v1694
    %v1910 = vunpack.c.l.b16 %v1695
    %v1911 = vunpack.c.l.b16 %v1696
    %v1912 = vunpack.c.l.b16 %v1697
    %v1913 = vunpack.c.l.b16 %v1698
    %v1914 = vpack.c.b16 %v1907, %v1906
    %v1915 = vpack.c.b16 %v1909, %v1908
    %v1916 = vpack.c.b16 %v1911, %v1910
    %v1917 = vpack.c.b16 %v1913, %v1912
    %v1923 = vsel %vm1549, %v1897, 0
    %1925 = vmatprep.subr.bf16.mxu0 0
    %1926 = vmatpush1.bf16.msra.mxu0 0
    %1927 = vmatprep.subr.bf16.mxu0 0
    %1928 = vmatpush1.bf16.msra.mxu0 0
    %1929 = vmatprep.subr.bf16.mxu0 0
    %1930 = vmatpush1.bf16.msra.mxu0 0
    %1931 = vmatprep.subr.bf16.mxu0 0
    %1932 = vmatpush1.bf16.msra.mxu0 0
    %1933 = vmatprep.subr.bf16.mxu0 0
    %1934 = vmatpush1.bf16.msra.mxu0 %v1917
    %1935 = vmatprep.subr.bf16.mxu0 0
    %1936 = vmatpush1.bf16.msra.mxu0 %v1916
    %1937 = vmatprep.subr.bf16.mxu0 0
    %1938 = vmatpush1.bf16.msra.mxu0 %v1915
    %1939 = vmatprep.subr.bf16.mxu0 0
    %1940 = vmatpush1.bf16.msra.mxu0 %v1914
    %1941 = vmatprep.subr.bf16.mxu0 0
    %1942 = vmatpush2.bf16.msra.mxu0 0
    %1943 = vmatprep.subr.bf16.mxu0 0
    %1944 = vmatpush2.bf16.msra.mxu0 0
    %1945 = vmatprep.subr.bf16.mxu0 0
    %1946 = vmatpush2.bf16.msra.mxu0 0
    %1947 = vmatprep.subr.bf16.mxu0 0
    %1948 = vmatpush2.bf16.msra.mxu0 0
    %1949 = vmatprep.subr.bf16.mxu0 0
    %1950 = vmatpush2.bf16.msra.mxu0 0
    %1951 = vmatprep.subr.bf16.mxu0 0
    %1952 = vmatpush2.bf16.msra.mxu0 0
    %1953 = vmatprep.subr.bf16.mxu0 0
    %1954 = vmatpush2.bf16.msra.mxu0 0
    %1955 = vmatprep.subr.bf16.mxu0 0
    %1956 = vmatpush2.bf16.msra.mxu0 0
    %1957 = vmatprep.mubr.bf16.mxu0 0
    %1958 = vmatmul.mubr.bf16.gmra.mxu0 %v1923
    %v1959 = vpop.f32.mrf.mxu0
    %v1960 = vadd.f32 0.0, %v1959
    %v1961 = vpop.f32.mrf.mxu0
    %v1962 = vpop.f32.mrf.mxu0
    %v1963 = vadd.f32 0.0, %v1962
    %v1964 = vpop.f32.mrf.mxu0
    %1965 = vmatprep.mubr.bf16.mxu0 0
    %1966 = vmatmul.mubr.bf16.gmra.mxu0 %v1729
    %v1967 = vpop.f32.mrf.mxu0
    %v1968 = vadd.f32 0.0, %v1967
    %v1969 = vpop.f32.mrf.mxu0
    %v1970 = vpop.f32.mrf.mxu0
    %v1971 = vadd.f32 0.0, %v1970
    %v1972 = vpop.f32.mrf.mxu0
    %1973 = vmatprep.mubr.bf16.mxu0 0
    %1974 = vmatmul.mubr.bf16.gmra.mxu0 %v1732
    %v1975 = vpop.f32.mrf.mxu0
    %v1976 = vadd.f32 0.0, %v1975
    %v1977 = vpop.f32.mrf.mxu0
    %v1978 = vpop.f32.mrf.mxu0
    %v1979 = vadd.f32 0.0, %v1978
    %v1980 = vpop.f32.mrf.mxu0
    %1981 = vmatprep.mubr.bf16.mxu0 0
    %1982 = vmatmul.mubr.bf16.gmra.mxu0 %v1735
    %v1983 = vpop.f32.mrf.mxu0
    %v1984 = vadd.f32 0.0, %v1983
    %v1985 = vpop.f32.mrf.mxu0
    %v1986 = vpop.f32.mrf.mxu0
    %v1987 = vadd.f32 0.0, %v1986
    %v1988 = vpop.f32.mrf.mxu0
    %1989 = vdwg.mxu0
    %v1990 = vadd.f32 %v1867, %v1960
    %v1991 = vadd.f32 %v1870, %v1963
    %v1992 = vadd.f32 %v1875, %v1968
    %v1993 = vadd.f32 %v1878, %v1971
    %v1994 = vadd.f32 %v1883, %v1976
    %v1995 = vadd.f32 %v1886, %v1979
    %v1996 = vadd.f32 %v1891, %v1984
    %v1997 = vadd.f32 %v1894, %v1987
    %v1998 = vld [vmem:[#allocation2] sm:$0x1]
    %v2000 = vlaneseq
    %v2001 = vshrl.u32 %v2000, 7
    %v2002 = vsub.s32 0, %v2001
    %v2003 = vrot.slane %v1998, %v2002
    %2004 = vset.pattern.permute.xlu0 0
    %2005 = vperm.xlu0 %2004, %v2003
    %v2006 = vpop.permute.xlu0 %2005
    %v2008 = vadd.f32 %v1990, %v2006
    %v2009 = vadd.f32 %v1991, %v2006
    %v2010 = vadd.f32 %v1992, %v2006
    %v2011 = vadd.f32 %v1993, %v2006
    %v2012 = vadd.f32 %v1994, %v2006
    %v2013 = vadd.f32 %v1995, %v2006
    %v2014 = vadd.f32 %v1996, %v2006
    %v2015 = vadd.f32 %v1997, %v2006
    %vm2016 = vcmask 15360
    %2017 = vst.msk [vmem:[%s13] sm:$0xff] %vm2016, %v2008
    %2018 = vst.msk [vmem:[%s13 + $0x8] sm:$0xff] %vm2016, %v2009
    %2019 = vst.msk [vmem:[%s13 + $0x10] sm:$0xff] %vm2016, %v2010
    %2020 = vst.msk [vmem:[%s13 + $0x18] sm:$0xff] %vm2016, %v2011
    %2021 = vst.msk [vmem:[%s13 + $0x20] sm:$0xff] %vm2016, %v2012
    %2022 = vst.msk [vmem:[%s13 + $0x28] sm:$0xff] %vm2016, %v2013
    %2023 = vst.msk [vmem:[%s13 + $0x30] sm:$0xff] %vm2016, %v2014
    %2024 = vst.msk [vmem:[%s13 + $0x38] sm:$0xff] %vm2016, %v2015
    // Predicated region
    $region58: #{tpu_custom_call.1} parent=1 // pred_check
      _
    $region59: #{tpu_custom_call.1} parent=1 // pred_check_branch
      %2026 = sbr.rel (0) target = $region61
    $region60: #{tpu_custom_call.1} parent=1 // pred_region
      _
    $region61: #{tpu_custom_call.1} parent=1 // pred_fallthru
      _
    // Predicated region
    $region62: #{tpu_custom_call.1} parent=1 // pred_check
      _
    $region63: #{tpu_custom_call.1} parent=1 // pred_check_branch
      %2028 = sbr.rel (0) target = $region65
    $region64: #{tpu_custom_call.1} parent=1 // pred_region
      _
    $region65: #{tpu_custom_call.1} parent=1 // pred_fallthru
      _
    %2029 = vsyncpa [#allocation4], 1

</llo_original>
